<compile_context>
chip_gen: v6e
topology: v6e:2x2x1
jax: 0.10.0
libtpu: 0.0.40
codegen_flags: <defaults>
</compile_context>

<pallas_src>
import math

import jax
import jax.numpy as jnp
from jax.experimental import pallas as pl
from jax.experimental.pallas import tpu as pltpu


# ----------------------------------------------------------------------------
# Pallas kernel: one (batch, query-tile) step of the MHSA-relpos forward.
# ----------------------------------------------------------------------------
def _mhsa_relpos_kernel(
    x_ref,      # (T, F)    f32  full input sequence for this batch element
    mask_ref,   # (1, T)    f32  1.0 inside sequence, 0.0 outside
    gamma_ref,  # (1, F)    f32  layernorm scale
    beta_ref,   # (1, F)    f32  layernorm shift
    wqkv_ref,   # (F, 3F)   bf16 qkv weight (pre-transposed, q-cols pre-scaled)
    bqkv_ref,   # (1, 3F)   f32  qkv bias (q-part pre-scaled)
    pew_ref,    # (F, W)    bf16 PE window for this query tile (per-head rows)
    pbu_ref,    # (H, Dh)   f32  pos_bias_u (pre-scaled)
    pbv_ref,    # (H, Dh)   f32  pos_bias_v (pre-scaled)
    wout_ref,   # (F, F)    bf16 output projection weight (pre-transposed)
    bout_ref,   # (1, F)    f32  output projection bias
    o_ref,      # (tq, F)        output tile
    qkv_ref,    # (T, 3F)   f32  VMEM scratch, persists across the qi axis
):
    qi = pl.program_id(1)
    T, F = x_ref.shape
    H, Dh = pbu_ref.shape
    tq = o_ref.shape[0]
    W = pew_ref.shape[1]

    # --- LayerNorm + fused QKV projection, once per batch element ----------
    @pl.when(qi == 0)
    def _():
        x = x_ref[...].astype(jnp.float32)
        mean = jnp.mean(x, axis=-1, keepdims=True)
        var = jnp.mean(jnp.square(x - mean), axis=-1, keepdims=True)
        xn = (x - mean) * jax.lax.rsqrt(var + 1e-5)          # torch eps=1e-5
        xn = xn * gamma_ref[...] + beta_ref[...]
        qkv_ref[...] = jnp.dot(xn.astype(jnp.bfloat16), wqkv_ref[...],
                               preferred_element_type=jnp.float32
                               ) + bqkv_ref[...]

    # query rows for this tile (softmax scale already folded into weights).
    q0 = pl.multiple_of(qi * tq, tq)
    q_tile = qkv_ref[pl.ds(q0, tq), 0:F]                     # (tq, F) f32

    # Additive key mask: 0 inside, large finite negative outside (no NaNs).
    # (Not scaled by 1/sqrt(Dh); immaterial at -1e30.)
    add_mask = jnp.where(mask_ref[...] > 0.5,
                         jnp.float32(0.0), jnp.float32(-1e30))   # (1, T)

    # Row-dependent left rotation for the rel-shift inside the PE window:
    # row r of the tile must be rotated left by s_r = tq-1-r.  Barrel shifter
    # of ceil(log2(tq)) stages; each stage is one static XLU lane rotation
    # (pltpu.roll) + a (tq,1)-masked select.  No wraparound reaches the kept
    # first T columns since s_r + j <= tq-1 + T-1 < W.
    r = jax.lax.broadcasted_iota(jnp.int32, (tq, 1), 0)
    s = (tq - 1) - r
    stages = []
    bit = 1
    while bit < tq:
        stages.append((bit, (s & bit) != 0))
        bit *= 2

    contract_last = (((1,), (1,)), ((), ()))                 # dot over minor dims

    head_out = []
    for h in range(H):                                       # static unroll; H small
        sl = slice(h * Dh, (h + 1) * Dh)
        q_u = (q_tile[:, sl] + pbu_ref[h:h + 1, :]).astype(jnp.bfloat16)
        q_v = (q_tile[:, sl] + pbv_ref[h:h + 1, :]).astype(jnp.bfloat16)
        k_h = qkv_ref[:, F + h * Dh:F + (h + 1) * Dh].astype(jnp.bfloat16)
        v_h = qkv_ref[:, 2 * F + h * Dh:2 * F + (h + 1) * Dh].astype(jnp.bfloat16)

        # content term: (tq, Dh) x (T, Dh)^T on the MXU -> (tq, T)
        ac = jax.lax.dot_general(q_u, k_h, contract_last,
                                 preferred_element_type=jnp.float32)

        # positional term: (tq, Dh) x (Dh, W) on the MXU, then rel-shift.
        bd = jnp.dot(q_v, pew_ref[sl, :], preferred_element_type=jnp.float32)
        for amt, stage_mask in stages:
            # left-rotate by `amt` == roll right by W - amt (XLU).
            bd = jnp.where(stage_mask, pltpu.roll(bd, shift=W - amt, axis=1), bd)
        bd = bd[:, :T]

        # softmax in f32; normalization deferred to after the p @ v matmul.
        attn = ac + bd + add_mask
        mx = jnp.max(attn, axis=-1, keepdims=True)
        p = jnp.exp(attn - mx)
        denom = jnp.sum(p, axis=-1, keepdims=True)
        o_h = jnp.dot(p.astype(jnp.bfloat16), v_h,
                      preferred_element_type=jnp.float32)    # (tq, Dh)
        head_out.append(o_h * pl.reciprocal(denom, approx=True))

    # Lane-dense (tq, F) operand for the output projection (no scratch slab).
    att = jnp.concatenate(head_out, axis=-1).astype(jnp.bfloat16)
    out = jnp.dot(att, wout_ref[...],
                  preferred_element_type=jnp.float32) + bout_ref[...]

    # att_weights_dropout / pos_emb_dropout / BroadcastDropout: identity (eval).
    o_ref[...] = out.astype(o_ref.dtype)


# ----------------------------------------------------------------------------
# Parameter / operand preparation (runs once in plain JAX).
# ----------------------------------------------------------------------------
def sinusoidal_pe(pos_seq, embed_dim):
    inv_freq = 1.0 / (10000.0 ** (jnp.arange(0.0, embed_dim, 2.0) / embed_dim))
    sinusoid = jnp.outer(pos_seq, inv_freq)
    pe = jnp.zeros((pos_seq.shape[0], embed_dim), jnp.float32)
    pe = pe.at[:, 0::2].set(jnp.sin(sinusoid))
    pe = pe.at[:, 1::2].set(jnp.cos(sinusoid))
    return pe


def build_pe_windows(T, tq, F, w_pos):
    """(n_tq, F, W) bf16: per-query-tile PE column windows.

    For tile qi (query rows [qi*tq, (qi+1)*tq)), column c of window qi holds
    linear_pos(pe[pos_seq[col0 + c]]) with col0 = T - (qi+1)*tq, so that the
    in-kernel rel-shift only needs row rotations of at most tq-1.  Columns
    past the 2T-1 valid positions are zero padding (never selected).
    """
    n_tq = T // tq
    W = ((T + tq + 127) // 128) * 128                 # lane-aligned window width
    pos_seq = jnp.arange(T - 1, -T, -1, dtype=jnp.float32)          # (2T-1,)
    pe = sinusoidal_pe(pos_seq, F) @ w_pos.T                        # linear_pos (no bias)
    pe = jnp.concatenate([pe, jnp.zeros((W, F), jnp.float32)], axis=0)
    wins = []
    for qi in range(n_tq):
        col0 = T - (qi + 1) * tq
        wins.append(pe[col0:col0 + W, :].T)                         # (F, W)
    return jnp.stack(wins).astype(jnp.bfloat16)                     # (n_tq, F, W)


def _pick_tiling(T):
    """Generation-aware query-tile size and VMEM limit."""
    try:
        cap = int(pltpu.get_tpu_info().vmem_capacity_bytes)
    except Exception:
        cap = 64 * 1024 * 1024                        # conservative fallback
    vmem_limit = min(int(cap * 0.78), 100 * 1024 * 1024)
    target = 512 if cap >= (100 << 20) else 256       # v5e/v6e: 128 MiB; v7x: 64 MiB
    tq = min(T, target)
    while T % tq:
        tq -= 1
    if tq != T and tq % 8:                            # keep sublane-aligned blocks
        tq = T
    return tq, vmem_limit


def prepare_kernel_params(params, T, H, tq):
    """Fold the softmax scale into weights, transpose to matmul layout, bf16."""
    F = params["w_out_t"].shape[0]
    Dh = F // H
    scale = math.sqrt(1.0 / float(Dh))

    w_qkv = params["w_qkv_t"].T                                     # (F, 3F)
    w_qkv = jnp.concatenate([w_qkv[:, :F] * scale, w_qkv[:, F:]], axis=1)
    b_qkv = jnp.concatenate([params["b_qkv"][:, :F] * scale,
                             params["b_qkv"][:, F:]], axis=1)
    return {
        "ln_gamma": params["ln_gamma"],
        "ln_beta": params["ln_beta"],
        "w_qkv": w_qkv.astype(jnp.bfloat16),
        "b_qkv": b_qkv,
        "pe_win": build_pe_windows(T, tq, F, params["w_pos"]),
        "pos_bias_u": params["pos_bias_u"] * scale,
        "pos_bias_v": params["pos_bias_v"] * scale,
        "w_out": params["w_out_t"].T.astype(jnp.bfloat16),          # (F, F)
        "b_out": params["b_out"],
    }


# ----------------------------------------------------------------------------
# Wrapper calling pallas_call.
# ----------------------------------------------------------------------------
def conformer_mhsa_rel_pos(x, sequence_mask, kp, vmem_limit_bytes):
    B, T, F = x.shape
    H, Dh = kp["pos_bias_u"].shape
    n_tq, _, W = kp["pe_win"].shape
    tq = T // n_tq
    mask_f = sequence_mask.astype(jnp.float32).reshape(B, 1, T)

    kernel = pl.pallas_call(
        _mhsa_relpos_kernel,
        out_shape=jax.ShapeDtypeStruct((B, T, F), x.dtype),
        grid_spec=pltpu.PrefetchScalarGridSpec(
            num_scalar_prefetch=0,
            grid=(B, n_tq),
            in_specs=[
                pl.BlockSpec((None, T, F), lambda b, qi: (b, 0, 0)),   # x (resident over qi)
                pl.BlockSpec((None, 1, T), lambda b, qi: (b, 0, 0)),   # mask
                pl.BlockSpec((1, F), lambda b, qi: (0, 0)),            # gamma
                pl.BlockSpec((1, F), lambda b, qi: (0, 0)),            # beta
                pl.BlockSpec((F, 3 * F), lambda b, qi: (0, 0)),        # w_qkv (bf16)
                pl.BlockSpec((1, 3 * F), lambda b, qi: (0, 0)),        # b_qkv
                pl.BlockSpec((None, F, W), lambda b, qi: (qi, 0, 0)),  # PE window
                pl.BlockSpec((H, Dh), lambda b, qi: (0, 0)),           # pos_bias_u
                pl.BlockSpec((H, Dh), lambda b, qi: (0, 0)),           # pos_bias_v
                pl.BlockSpec((F, F), lambda b, qi: (0, 0)),            # w_out (bf16)
                pl.BlockSpec((1, F), lambda b, qi: (0, 0)),            # b_out
            ],
            out_specs=pl.BlockSpec((None, tq, F), lambda b, qi: (b, qi, 0)),
            scratch_shapes=[pltpu.VMEM((T, 3 * F), jnp.float32)],       # qkv, per batch
        ),
        compiler_params=pltpu.CompilerParams(
            dimension_semantics=("parallel", "arbitrary"),
            vmem_limit_bytes=vmem_limit_bytes),
    )
    return kernel(x, mask_f, kp["ln_gamma"], kp["ln_beta"], kp["w_qkv"],
                  kp["b_qkv"], kp["pe_win"], kp["pos_bias_u"],
                  kp["pos_bias_v"], kp["w_out"], kp["b_out"])


# ----------------------------------------------------------------------------
# Deterministic parameter init (shapes follow the module's __init__).
# ----------------------------------------------------------------------------
def init_params(key, F, H):
    Dh = F // H
    ks = jax.random.split(key, 8)

    def xavier_uniform(k, shape):
        fan_out, fan_in = shape[0], shape[1]
        bound = math.sqrt(6.0 / (fan_in + fan_out))
        return jax.random.uniform(k, shape, jnp.float32, -bound, bound)

    return {
        "ln_gamma": jnp.ones((1, F), jnp.float32),
        "ln_beta": jnp.zeros((1, F), jnp.float32),
        "w_qkv_t": xavier_uniform(ks[0], (3 * F, F)),    # torch layout (out, in)
        "b_qkv": 0.02 * jax.random.normal(ks[1], (1, 3 * F), jnp.float32),
        "w_pos": xavier_uniform(ks[2], (F, F)),          # linear_pos, bias=False
        "pos_bias_u": xavier_uniform(ks[3], (H, Dh)),
        "pos_bias_v": xavier_uniform(ks[4], (H, Dh)),
        "w_out_t": xavier_uniform(ks[5], (F, F)),        # torch layout (out, in)
        "b_out": 0.02 * jax.random.normal(ks[6], (1, F), jnp.float32),
    }


# ----------------------------------------------------------------------------
# Pure-JAX f32 reference of the PyTorch forward (for validation).
# ----------------------------------------------------------------------------
def reference_forward(x, seq_mask, params, H):
    B, T, F = x.shape
    Dh = F // H
    mean = x.mean(-1, keepdims=True)
    var = ((x - mean) ** 2).mean(-1, keepdims=True)
    xn = (x - mean) / jnp.sqrt(var + 1e-5)
    xn = xn * params["ln_gamma"] + params["ln_beta"]
    qkv = xn @ params["w_qkv_t"].T + params["b_qkv"]
    q, k, v = jnp.split(qkv, 3, axis=-1)
    q = q.reshape(B, T, H, Dh)
    k = k.reshape(B, T, H, Dh)
    v = v.reshape(B, T, H, Dh)

    pos_seq = jnp.arange(T - 1, -T, -1, dtype=jnp.float32)
    pe = sinusoidal_pe(pos_seq, F) @ params["w_pos"].T
    pe = pe.reshape(2 * T - 1, H, Dh)

    qu = q + params["pos_bias_u"][None, None]
    qv = q + params["pos_bias_v"][None, None]
    ac = jnp.einsum("bihf,bjhf->bhij", qu, k)
    bd_full = jnp.einsum("bihf,jhf->bhij", qv, pe)           # (B, H, T, 2T-1)
    idx = (T - 1) - jnp.arange(T)[:, None] + jnp.arange(T)[None, :]
    bd = jnp.take_along_axis(bd_full,
                             jnp.broadcast_to(idx, (B, H, T, T)), axis=-1)
    mask_add = jnp.where(seq_mask, 0.0, -jnp.inf)[:, None, None, :]
    attn = (ac + bd + mask_add) * math.sqrt(1.0 / float(Dh))
    w = jax.nn.softmax(attn, axis=-1)
    out = jnp.einsum("bhij,bjhf->bihf", w, v).reshape(B, T, F)
    return out @ params["w_out_t"].T + params["b_out"]


if __name__ == "__main__":
    B, T, F, H = 2, 8, 32, 4
    key = jax.random.PRNGKey(0)
    kx, kp = jax.random.split(key)

    x = jax.random.normal(kx, (B, T, F), jnp.float32)
    lengths = jnp.array([T, 5])
    sequence_mask = jnp.arange(T)[None, :] < lengths[:, None]   # (B, T) bool
    params = init_params(kp, F, H)

    tq, vmem_limit = _pick_tiling(T)
    kernel_params = prepare_kernel_params(params, T, H, tq)

    out = conformer_mhsa_rel_pos(x, sequence_mask, kernel_params, vmem_limit)
    out = jax.block_until_ready(out)

    ref = reference_forward(x, sequence_mask, params, H)
    assert out.shape == (B, T, F)
    # Tolerance sized for bf16 MXU operands with f32 accumulation + approx
    # reciprocal; the reference is pure f32.
    max_err = float(jnp.max(jnp.abs(out - ref)))
    assert max_err < 6e-2, max_err
    print("KERNEL_OK")
</pallas_src>

<mosaic_0001>
module attributes {stable_mosaic.version = 11 : i64} {
  func.func @_mhsa_relpos_kernel(%arg0: i32, %arg1: i32, %arg2: memref<1x8x32xf32, #tpu.memory_space<vmem>>, %arg3: memref<1x1x8xf32, #tpu.memory_space<vmem>>, %arg4: memref<1x32xf32, #tpu.memory_space<vmem>>, %arg5: memref<1x32xf32, #tpu.memory_space<vmem>>, %arg6: memref<32x96xbf16, #tpu.memory_space<vmem>>, %arg7: memref<1x96xf32, #tpu.memory_space<vmem>>, %arg8: memref<1x32x128xbf16, #tpu.memory_space<vmem>>, %arg9: memref<4x8xf32, #tpu.memory_space<vmem>>, %arg10: memref<4x8xf32, #tpu.memory_space<vmem>>, %arg11: memref<32x32xbf16, #tpu.memory_space<vmem>>, %arg12: memref<1x32xf32, #tpu.memory_space<vmem>>, %arg13: memref<1x8x32xf32, #tpu.memory_space<vmem>>, %arg14: memref<8x96xf32, #tpu.memory_space<vmem>>) attributes {dimension_semantics = [#tpu.dimension_semantics<parallel>, #tpu.dimension_semantics<arbitrary>], iteration_bounds = array<i64: 2, 1>, scalar_prefetch = 0 : i64, scratch_operands = 1 : i64, tpu.core_type = #tpu.core_type<tc>, window_params = [{transform_indices = @transform_0, window_bounds = array<i64: 1, 8, 32>}, {transform_indices = @transform_1, window_bounds = array<i64: 1, 1, 8>}, {pipeline_mode = #tpu.pipeline_mode<synchronous>, transform_indices = @transform_2, window_bounds = array<i64: 1, 32>}, {pipeline_mode = #tpu.pipeline_mode<synchronous>, transform_indices = @transform_3, window_bounds = array<i64: 1, 32>}, {pipeline_mode = #tpu.pipeline_mode<synchronous>, transform_indices = @transform_4, window_bounds = array<i64: 32, 96>}, {pipeline_mode = #tpu.pipeline_mode<synchronous>, transform_indices = @transform_5, window_bounds = array<i64: 1, 96>}, {transform_indices = @transform_6, window_bounds = array<i64: 1, 32, 128>}, {pipeline_mode = #tpu.pipeline_mode<synchronous>, transform_indices = @transform_7, window_bounds = array<i64: 4, 8>}, {pipeline_mode = #tpu.pipeline_mode<synchronous>, transform_indices = @transform_8, window_bounds = array<i64: 4, 8>}, {pipeline_mode = #tpu.pipeline_mode<synchronous>, transform_indices = @transform_9, window_bounds = array<i64: 32, 32>}, {pipeline_mode = #tpu.pipeline_mode<synchronous>, transform_indices = @transform_10, window_bounds = array<i64: 1, 32>}, {transform_indices = @transform_11, window_bounds = array<i64: 1, 8, 32>}]} {
    %c0_i32 = arith.constant 0 : i32
    %0 = arith.cmpi eq, %arg1, %c0_i32 : i32
    %1 = arith.extui %0 : i1 to i32
    %c0_i32_0 = arith.constant 0 : i32
    %2 = arith.cmpi ne, %1, %c0_i32_0 : i32
    scf.if %2 {
      %c0_76 = arith.constant 0 : index
      %c0_77 = arith.constant 0 : index
      %c0_78 = arith.constant 0 : index
      %223 = vector.load %arg2[%c0_76, %c0_77, %c0_78] : memref<1x8x32xf32, #tpu.memory_space<vmem>>, vector<1x8x32xf32>
      %224 = vector.shape_cast %223 : vector<1x8x32xf32> to vector<8x32xf32>
      %cst_79 = arith.constant dense<0.000000e+00> : vector<8xf32>
      %225 = vector.multi_reduction <add>, %224, %cst_79 [1] : vector<8x32xf32> to vector<8xf32>
      %226 = vector.shape_cast %225 : vector<8xf32> to vector<8x1xf32>
      %cst_80 = arith.constant 3.200000e+01 : f32
      %227 = vector.broadcast %cst_80 : f32 to vector<8x1xf32>
      %228 = arith.divf %226, %227 : vector<8x1xf32>
      %229 = vector.broadcast %228 : vector<8x1xf32> to vector<8x32xf32>
      %230 = arith.subf %224, %229 : vector<8x32xf32>
      %231 = arith.mulf %230, %230 : vector<8x32xf32>
      %cst_81 = arith.constant dense<0.000000e+00> : vector<8xf32>
      %232 = vector.multi_reduction <add>, %231, %cst_81 [1] : vector<8x32xf32> to vector<8xf32>
      %233 = vector.shape_cast %232 : vector<8xf32> to vector<8x1xf32>
      %cst_82 = arith.constant 3.200000e+01 : f32
      %234 = vector.broadcast %cst_82 : f32 to vector<8x1xf32>
      %235 = arith.divf %233, %234 : vector<8x1xf32>
      %236 = vector.broadcast %228 : vector<8x1xf32> to vector<8x32xf32>
      %237 = arith.subf %224, %236 : vector<8x32xf32>
      %cst_83 = arith.constant 9.99999974E-6 : f32
      %238 = vector.broadcast %cst_83 : f32 to vector<8x1xf32>
      %239 = arith.addf %235, %238 : vector<8x1xf32>
      %240 = math.rsqrt %239 : vector<8x1xf32>
      %241 = vector.broadcast %240 : vector<8x1xf32> to vector<8x32xf32>
      %242 = arith.mulf %237, %241 : vector<8x32xf32>
      %c0_84 = arith.constant 0 : index
      %c0_85 = arith.constant 0 : index
      %243 = vector.load %arg4[%c0_84, %c0_85] : memref<1x32xf32, #tpu.memory_space<vmem>>, vector<1x32xf32>
      %244 = vector.broadcast %243 : vector<1x32xf32> to vector<8x32xf32>
      %245 = arith.mulf %242, %244 : vector<8x32xf32>
      %c0_86 = arith.constant 0 : index
      %c0_87 = arith.constant 0 : index
      %246 = vector.load %arg5[%c0_86, %c0_87] : memref<1x32xf32, #tpu.memory_space<vmem>>, vector<1x32xf32>
      %247 = vector.broadcast %246 : vector<1x32xf32> to vector<8x32xf32>
      %248 = arith.addf %245, %247 : vector<8x32xf32>
      %249 = arith.truncf %248 : vector<8x32xf32> to vector<8x32xbf16>
      %c0_88 = arith.constant 0 : index
      %c0_89 = arith.constant 0 : index
      %250 = vector.load %arg6[%c0_88, %c0_89] : memref<32x96xbf16, #tpu.memory_space<vmem>>, vector<32x96xbf16>
      %cst_90 = arith.constant dense<0.000000e+00> : vector<8x96xf32>
      %251 = tpu.matmul %249, %250, %cst_90 {dimension_numbers = #tpu.dot_dimension_numbers<[1], [0], [0], [1], [0, 0, 1, 1], [], []>} : vector<8x32xbf16>, vector<32x96xbf16>, vector<8x96xf32> -> vector<8x96xf32>
      %c0_91 = arith.constant 0 : index
      %c0_92 = arith.constant 0 : index
      %252 = vector.load %arg7[%c0_91, %c0_92] : memref<1x96xf32, #tpu.memory_space<vmem>>, vector<1x96xf32>
      %253 = vector.broadcast %252 : vector<1x96xf32> to vector<8x96xf32>
      %254 = arith.addf %251, %253 : vector<8x96xf32>
      %c0_93 = arith.constant 0 : index
      %c0_94 = arith.constant 0 : index
      %255 = vector.load %arg14[%c0_93, %c0_94] : memref<8x96xf32, #tpu.memory_space<vmem>>, vector<8x96xf32>
      tpu.vector_store %arg14[%c0_93, %c0_94], %254 {strides = array<i32>} : memref<8x96xf32, #tpu.memory_space<vmem>>, vector<8x96xf32>,
    } else {
    }
    %c8_i32 = arith.constant 8 : i32
    %3 = arith.muli %arg1, %c8_i32 : i32
    %4 = tpu.assume_multiple %3, 8 : i32
    %5 = arith.index_cast %4 : i32 to index
    %c0 = arith.constant 0 : index
    %6 = vector.load %arg14[%5, %c0] : memref<8x96xf32, #tpu.memory_space<vmem>>, vector<8x32xf32>
    %c0_1 = arith.constant 0 : index
    %c0_2 = arith.constant 0 : index
    %c0_3 = arith.constant 0 : index
    %7 = vector.load %arg3[%c0_1, %c0_2, %c0_3] : memref<1x1x8xf32, #tpu.memory_space<vmem>>, vector<1x1x8xf32>
    %8 = vector.shape_cast %7 : vector<1x1x8xf32> to vector<1x8xf32>
    %cst = arith.constant 5.000000e-01 : f32
    %9 = vector.broadcast %cst : f32 to vector<1x8xf32>
    %10 = arith.cmpf ogt, %8, %9 : vector<1x8xf32>
    %cst_4 = arith.constant 0.000000e+00 : f32
    %cst_5 = arith.constant -1.000000e+30 : f32
    %11 = vector.broadcast %cst_4 : f32 to vector<1x8xf32>
    %12 = vector.broadcast %cst_5 : f32 to vector<1x8xf32>
    %13 = arith.select %10, %11, %12 : vector<1x8xi1>, vector<1x8xf32>
    %14 = tpu.iota {dimensions = array<i32: 0>} : vector<8x1xi32>
    %c7_i32 = arith.constant 7 : i32
    %15 = vector.broadcast %c7_i32 : i32 to vector<8x1xi32>
    %16 = arith.subi %15, %14 : vector<8x1xi32>
    %c1_i32 = arith.constant 1 : i32
    %17 = vector.broadcast %c1_i32 : i32 to vector<8x1xi32>
    %18 = arith.andi %16, %17 : vector<8x1xi32>
    %c0_i32_6 = arith.constant 0 : i32
    %19 = vector.broadcast %c0_i32_6 : i32 to vector<8x1xi32>
    %20 = arith.cmpi ne, %18, %19 : vector<8x1xi32>
    %c2_i32 = arith.constant 2 : i32
    %21 = vector.broadcast %c2_i32 : i32 to vector<8x1xi32>
    %22 = arith.andi %16, %21 : vector<8x1xi32>
    %c0_i32_7 = arith.constant 0 : i32
    %23 = vector.broadcast %c0_i32_7 : i32 to vector<8x1xi32>
    %24 = arith.cmpi ne, %22, %23 : vector<8x1xi32>
    %c4_i32 = arith.constant 4 : i32
    %25 = vector.broadcast %c4_i32 : i32 to vector<8x1xi32>
    %26 = arith.andi %16, %25 : vector<8x1xi32>
    %c0_i32_8 = arith.constant 0 : i32
    %27 = vector.broadcast %c0_i32_8 : i32 to vector<8x1xi32>
    %28 = arith.cmpi ne, %26, %27 : vector<8x1xi32>
    %29 = vector.extract_strided_slice %6 {offsets = [0, 0], sizes = [8, 8], strides = [1, 1]} : vector<8x32xf32> to vector<8x8xf32>
    %c0_9 = arith.constant 0 : index
    %c0_10 = arith.constant 0 : index
    %30 = vector.load %arg9[%c0_9, %c0_10] : memref<4x8xf32, #tpu.memory_space<vmem>>, vector<1x8xf32>
    %31 = vector.broadcast %30 : vector<1x8xf32> to vector<8x8xf32>
    %32 = arith.addf %29, %31 : vector<8x8xf32>
    %33 = arith.truncf %32 : vector<8x8xf32> to vector<8x8xbf16>
    %34 = vector.extract_strided_slice %6 {offsets = [0, 0], sizes = [8, 8], strides = [1, 1]} : vector<8x32xf32> to vector<8x8xf32>
    %c0_11 = arith.constant 0 : index
    %c0_12 = arith.constant 0 : index
    %35 = vector.load %arg10[%c0_11, %c0_12] : memref<4x8xf32, #tpu.memory_space<vmem>>, vector<1x8xf32>
    %36 = vector.broadcast %35 : vector<1x8xf32> to vector<8x8xf32>
    %37 = arith.addf %34, %36 : vector<8x8xf32>
    %38 = arith.truncf %37 : vector<8x8xf32> to vector<8x8xbf16>
    %c0_13 = arith.constant 0 : index
    %c32 = arith.constant 32 : index
    %39 = vector.load %arg14[%c0_13, %c32] : memref<8x96xf32, #tpu.memory_space<vmem>>, vector<8x8xf32>
    %40 = arith.truncf %39 : vector<8x8xf32> to vector<8x8xbf16>
    %c0_14 = arith.constant 0 : index
    %c64 = arith.constant 64 : index
    %41 = vector.load %arg14[%c0_14, %c64] : memref<8x96xf32, #tpu.memory_space<vmem>>, vector<8x8xf32>
    %42 = arith.truncf %41 : vector<8x8xf32> to vector<8x8xbf16>
    %cst_15 = arith.constant dense<0.000000e+00> : vector<8x8xf32>
    %43 = tpu.matmul %33, %40, %cst_15 {dimension_numbers = #tpu.dot_dimension_numbers<[1], [1], [0], [0], [0, 0, 1, 0], [], []>} : vector<8x8xbf16>, vector<8x8xbf16>, vector<8x8xf32> -> vector<8x8xf32>
    %c0_16 = arith.constant 0 : index
    %c0_17 = arith.constant 0 : index
    %c0_18 = arith.constant 0 : index
    %44 = vector.load %arg8[%c0_16, %c0_17, %c0_18] : memref<1x32x128xbf16, #tpu.memory_space<vmem>>, vector<1x8x128xbf16>
    %45 = vector.shape_cast %44 : vector<1x8x128xbf16> to vector<8x128xbf16>
    %cst_19 = arith.constant dense<0.000000e+00> : vector<8x128xf32>
    %46 = tpu.matmul %38, %45, %cst_19 {dimension_numbers = #tpu.dot_dimension_numbers<[1], [0], [0], [1], [0, 0, 1, 1], [], []>} : vector<8x8xbf16>, vector<8x128xbf16>, vector<8x128xf32> -> vector<8x128xf32>
    %c127_i32 = arith.constant 127 : i32
    %47 = tpu.dynamic_rotate %46 by %c127_i32 dim 1 : vector<8x128xf32>, i32 -> vector<8x128xf32>
    %48 = vector.shape_cast %20 : vector<8x1xi1> to vector<8x1xi1>
    %49 = vector.broadcast %48 : vector<8x1xi1> to vector<8x128xi1>
    %50 = arith.select %49, %47, %46 : vector<8x128xi1>, vector<8x128xf32>
    %c126_i32 = arith.constant 126 : i32
    %51 = tpu.dynamic_rotate %50 by %c126_i32 dim 1 : vector<8x128xf32>, i32 -> vector<8x128xf32>
    %52 = vector.shape_cast %24 : vector<8x1xi1> to vector<8x1xi1>
    %53 = vector.broadcast %52 : vector<8x1xi1> to vector<8x128xi1>
    %54 = arith.select %53, %51, %50 : vector<8x128xi1>, vector<8x128xf32>
    %c124_i32 = arith.constant 124 : i32
    %55 = tpu.dynamic_rotate %54 by %c124_i32 dim 1 : vector<8x128xf32>, i32 -> vector<8x128xf32>
    %56 = vector.shape_cast %28 : vector<8x1xi1> to vector<8x1xi1>
    %57 = vector.broadcast %56 : vector<8x1xi1> to vector<8x128xi1>
    %58 = arith.select %57, %55, %54 : vector<8x128xi1>, vector<8x128xf32>
    %59 = vector.extract_strided_slice %58 {offsets = [0, 0], sizes = [8, 8], strides = [1, 1]} : vector<8x128xf32> to vector<8x8xf32>
    %60 = arith.addf %43, %59 : vector<8x8xf32>
    %61 = vector.broadcast %13 : vector<1x8xf32> to vector<8x8xf32>
    %62 = arith.addf %60, %61 : vector<8x8xf32>
    %cst_20 = arith.constant dense<0xFF800000> : vector<8xf32>
    %63 = vector.multi_reduction <maximumf>, %62, %cst_20 [1] : vector<8x8xf32> to vector<8xf32>
    %64 = vector.shape_cast %63 : vector<8xf32> to vector<8x1xf32>
    %65 = vector.broadcast %64 : vector<8x1xf32> to vector<8x8xf32>
    %66 = arith.subf %62, %65 : vector<8x8xf32>
    %67 = math.exp %66 : vector<8x8xf32>
    %cst_21 = arith.constant dense<0.000000e+00> : vector<8xf32>
    %68 = vector.multi_reduction <add>, %67, %cst_21 [1] : vector<8x8xf32> to vector<8xf32>
    %69 = vector.shape_cast %68 : vector<8xf32> to vector<8x1xf32>
    %70 = arith.truncf %67 : vector<8x8xf32> to vector<8x8xbf16>
    %cst_22 = arith.constant dense<0.000000e+00> : vector<8x8xf32>
    %71 = tpu.matmul %70, %42, %cst_22 {dimension_numbers = #tpu.dot_dimension_numbers<[1], [0], [0], [1], [0, 0, 1, 1], [], []>} : vector<8x8xbf16>, vector<8x8xbf16>, vector<8x8xf32> -> vector<8x8xf32>
    %72 = tpu.reciprocal %69 {approx = true} : vector<8x1xf32> -> vector<8x1xf32>
    %73 = vector.broadcast %72 : vector<8x1xf32> to vector<8x8xf32>
    %74 = arith.mulf %71, %73 : vector<8x8xf32>
    %75 = vector.extract_strided_slice %6 {offsets = [0, 8], sizes = [8, 8], strides = [1, 1]} : vector<8x32xf32> to vector<8x8xf32>
    %c1 = arith.constant 1 : index
    %c0_23 = arith.constant 0 : index
    %76 = vector.load %arg9[%c1, %c0_23] : memref<4x8xf32, #tpu.memory_space<vmem>>, vector<1x8xf32>
    %77 = vector.broadcast %76 : vector<1x8xf32> to vector<8x8xf32>
    %78 = arith.addf %75, %77 : vector<8x8xf32>
    %79 = arith.truncf %78 : vector<8x8xf32> to vector<8x8xbf16>
    %80 = vector.extract_strided_slice %6 {offsets = [0, 8], sizes = [8, 8], strides = [1, 1]} : vector<8x32xf32> to vector<8x8xf32>
    %c1_24 = arith.constant 1 : index
    %c0_25 = arith.constant 0 : index
    %81 = vector.load %arg10[%c1_24, %c0_25] : memref<4x8xf32, #tpu.memory_space<vmem>>, vector<1x8xf32>
    %82 = vector.broadcast %81 : vector<1x8xf32> to vector<8x8xf32>
    %83 = arith.addf %80, %82 : vector<8x8xf32>
    %84 = arith.truncf %83 : vector<8x8xf32> to vector<8x8xbf16>
    %c0_26 = arith.constant 0 : index
    %c40 = arith.constant 40 : index
    %85 = vector.load %arg14[%c0_26, %c40] : memref<8x96xf32, #tpu.memory_space<vmem>>, vector<8x8xf32>
    %86 = arith.truncf %85 : vector<8x8xf32> to vector<8x8xbf16>
    %c0_27 = arith.constant 0 : index
    %c72 = arith.constant 72 : index
    %87 = vector.load %arg14[%c0_27, %c72] : memref<8x96xf32, #tpu.memory_space<vmem>>, vector<8x8xf32>
    %88 = arith.truncf %87 : vector<8x8xf32> to vector<8x8xbf16>
    %cst_28 = arith.constant dense<0.000000e+00> : vector<8x8xf32>
    %89 = tpu.matmul %79, %86, %cst_28 {dimension_numbers = #tpu.dot_dimension_numbers<[1], [1], [0], [0], [0, 0, 1, 0], [], []>} : vector<8x8xbf16>, vector<8x8xbf16>, vector<8x8xf32> -> vector<8x8xf32>
    %c0_29 = arith.constant 0 : index
    %c8 = arith.constant 8 : index
    %c0_30 = arith.constant 0 : index
    %90 = vector.load %arg8[%c0_29, %c8, %c0_30] : memref<1x32x128xbf16, #tpu.memory_space<vmem>>, vector<1x8x128xbf16>
    %91 = vector.shape_cast %90 : vector<1x8x128xbf16> to vector<8x128xbf16>
    %cst_31 = arith.constant dense<0.000000e+00> : vector<8x128xf32>
    %92 = tpu.matmul %84, %91, %cst_31 {dimension_numbers = #tpu.dot_dimension_numbers<[1], [0], [0], [1], [0, 0, 1, 1], [], []>} : vector<8x8xbf16>, vector<8x128xbf16>, vector<8x128xf32> -> vector<8x128xf32>
    %c127_i32_32 = arith.constant 127 : i32
    %93 = tpu.dynamic_rotate %92 by %c127_i32_32 dim 1 : vector<8x128xf32>, i32 -> vector<8x128xf32>
    %94 = vector.shape_cast %20 : vector<8x1xi1> to vector<8x1xi1>
    %95 = vector.broadcast %94 : vector<8x1xi1> to vector<8x128xi1>
    %96 = arith.select %95, %93, %92 : vector<8x128xi1>, vector<8x128xf32>
    %c126_i32_33 = arith.constant 126 : i32
    %97 = tpu.dynamic_rotate %96 by %c126_i32_33 dim 1 : vector<8x128xf32>, i32 -> vector<8x128xf32>
    %98 = vector.shape_cast %24 : vector<8x1xi1> to vector<8x1xi1>
    %99 = vector.broadcast %98 : vector<8x1xi1> to vector<8x128xi1>
    %100 = arith.select %99, %97, %96 : vector<8x128xi1>, vector<8x128xf32>
    %c124_i32_34 = arith.constant 124 : i32
    %101 = tpu.dynamic_rotate %100 by %c124_i32_34 dim 1 : vector<8x128xf32>, i32 -> vector<8x128xf32>
    %102 = vector.shape_cast %28 : vector<8x1xi1> to vector<8x1xi1>
    %103 = vector.broadcast %102 : vector<8x1xi1> to vector<8x128xi1>
    %104 = arith.select %103, %101, %100 : vector<8x128xi1>, vector<8x128xf32>
    %105 = vector.extract_strided_slice %104 {offsets = [0, 0], sizes = [8, 8], strides = [1, 1]} : vector<8x128xf32> to vector<8x8xf32>
    %106 = arith.addf %89, %105 : vector<8x8xf32>
    %107 = vector.broadcast %13 : vector<1x8xf32> to vector<8x8xf32>
    %108 = arith.addf %106, %107 : vector<8x8xf32>
    %cst_35 = arith.constant dense<0xFF800000> : vector<8xf32>
    %109 = vector.multi_reduction <maximumf>, %108, %cst_35 [1] : vector<8x8xf32> to vector<8xf32>
    %110 = vector.shape_cast %109 : vector<8xf32> to vector<8x1xf32>
    %111 = vector.broadcast %110 : vector<8x1xf32> to vector<8x8xf32>
    %112 = arith.subf %108, %111 : vector<8x8xf32>
    %113 = math.exp %112 : vector<8x8xf32>
    %cst_36 = arith.constant dense<0.000000e+00> : vector<8xf32>
    %114 = vector.multi_reduction <add>, %113, %cst_36 [1] : vector<8x8xf32> to vector<8xf32>
    %115 = vector.shape_cast %114 : vector<8xf32> to vector<8x1xf32>
    %116 = arith.truncf %113 : vector<8x8xf32> to vector<8x8xbf16>
    %cst_37 = arith.constant dense<0.000000e+00> : vector<8x8xf32>
    %117 = tpu.matmul %116, %88, %cst_37 {dimension_numbers = #tpu.dot_dimension_numbers<[1], [0], [0], [1], [0, 0, 1, 1], [], []>} : vector<8x8xbf16>, vector<8x8xbf16>, vector<8x8xf32> -> vector<8x8xf32>
    %118 = tpu.reciprocal %115 {approx = true} : vector<8x1xf32> -> vector<8x1xf32>
    %119 = vector.broadcast %118 : vector<8x1xf32> to vector<8x8xf32>
    %120 = arith.mulf %117, %119 : vector<8x8xf32>
    %121 = vector.extract_strided_slice %6 {offsets = [0, 16], sizes = [8, 8], strides = [1, 1]} : vector<8x32xf32> to vector<8x8xf32>
    %c2 = arith.constant 2 : index
    %c0_38 = arith.constant 0 : index
    %122 = vector.load %arg9[%c2, %c0_38] : memref<4x8xf32, #tpu.memory_space<vmem>>, vector<1x8xf32>
    %123 = vector.broadcast %122 : vector<1x8xf32> to vector<8x8xf32>
    %124 = arith.addf %121, %123 : vector<8x8xf32>
    %125 = arith.truncf %124 : vector<8x8xf32> to vector<8x8xbf16>
    %126 = vector.extract_strided_slice %6 {offsets = [0, 16], sizes = [8, 8], strides = [1, 1]} : vector<8x32xf32> to vector<8x8xf32>
    %c2_39 = arith.constant 2 : index
    %c0_40 = arith.constant 0 : index
    %127 = vector.load %arg10[%c2_39, %c0_40] : memref<4x8xf32, #tpu.memory_space<vmem>>, vector<1x8xf32>
    %128 = vector.broadcast %127 : vector<1x8xf32> to vector<8x8xf32>
    %129 = arith.addf %126, %128 : vector<8x8xf32>
    %130 = arith.truncf %129 : vector<8x8xf32> to vector<8x8xbf16>
    %c0_41 = arith.constant 0 : index
    %c48 = arith.constant 48 : index
    %131 = vector.load %arg14[%c0_41, %c48] : memref<8x96xf32, #tpu.memory_space<vmem>>, vector<8x8xf32>
    %132 = arith.truncf %131 : vector<8x8xf32> to vector<8x8xbf16>
    %c0_42 = arith.constant 0 : index
    %c80 = arith.constant 80 : index
    %133 = vector.load %arg14[%c0_42, %c80] : memref<8x96xf32, #tpu.memory_space<vmem>>, vector<8x8xf32>
    %134 = arith.truncf %133 : vector<8x8xf32> to vector<8x8xbf16>
    %cst_43 = arith.constant dense<0.000000e+00> : vector<8x8xf32>
    %135 = tpu.matmul %125, %132, %cst_43 {dimension_numbers = #tpu.dot_dimension_numbers<[1], [1], [0], [0], [0, 0, 1, 0], [], []>} : vector<8x8xbf16>, vector<8x8xbf16>, vector<8x8xf32> -> vector<8x8xf32>
    %c0_44 = arith.constant 0 : index
    %c16 = arith.constant 16 : index
    %c0_45 = arith.constant 0 : index
    %136 = vector.load %arg8[%c0_44, %c16, %c0_45] : memref<1x32x128xbf16, #tpu.memory_space<vmem>>, vector<1x8x128xbf16>
    %137 = vector.shape_cast %136 : vector<1x8x128xbf16> to vector<8x128xbf16>
    %cst_46 = arith.constant dense<0.000000e+00> : vector<8x128xf32>
    %138 = tpu.matmul %130, %137, %cst_46 {dimension_numbers = #tpu.dot_dimension_numbers<[1], [0], [0], [1], [0, 0, 1, 1], [], []>} : vector<8x8xbf16>, vector<8x128xbf16>, vector<8x128xf32> -> vector<8x128xf32>
    %c127_i32_47 = arith.constant 127 : i32
    %139 = tpu.dynamic_rotate %138 by %c127_i32_47 dim 1 : vector<8x128xf32>, i32 -> vector<8x128xf32>
    %140 = vector.shape_cast %20 : vector<8x1xi1> to vector<8x1xi1>
    %141 = vector.broadcast %140 : vector<8x1xi1> to vector<8x128xi1>
    %142 = arith.select %141, %139, %138 : vector<8x128xi1>, vector<8x128xf32>
    %c126_i32_48 = arith.constant 126 : i32
    %143 = tpu.dynamic_rotate %142 by %c126_i32_48 dim 1 : vector<8x128xf32>, i32 -> vector<8x128xf32>
    %144 = vector.shape_cast %24 : vector<8x1xi1> to vector<8x1xi1>
    %145 = vector.broadcast %144 : vector<8x1xi1> to vector<8x128xi1>
    %146 = arith.select %145, %143, %142 : vector<8x128xi1>, vector<8x128xf32>
    %c124_i32_49 = arith.constant 124 : i32
    %147 = tpu.dynamic_rotate %146 by %c124_i32_49 dim 1 : vector<8x128xf32>, i32 -> vector<8x128xf32>
    %148 = vector.shape_cast %28 : vector<8x1xi1> to vector<8x1xi1>
    %149 = vector.broadcast %148 : vector<8x1xi1> to vector<8x128xi1>
    %150 = arith.select %149, %147, %146 : vector<8x128xi1>, vector<8x128xf32>
    %151 = vector.extract_strided_slice %150 {offsets = [0, 0], sizes = [8, 8], strides = [1, 1]} : vector<8x128xf32> to vector<8x8xf32>
    %152 = arith.addf %135, %151 : vector<8x8xf32>
    %153 = vector.broadcast %13 : vector<1x8xf32> to vector<8x8xf32>
    %154 = arith.addf %152, %153 : vector<8x8xf32>
    %cst_50 = arith.constant dense<0xFF800000> : vector<8xf32>
    %155 = vector.multi_reduction <maximumf>, %154, %cst_50 [1] : vector<8x8xf32> to vector<8xf32>
    %156 = vector.shape_cast %155 : vector<8xf32> to vector<8x1xf32>
    %157 = vector.broadcast %156 : vector<8x1xf32> to vector<8x8xf32>
    %158 = arith.subf %154, %157 : vector<8x8xf32>
    %159 = math.exp %158 : vector<8x8xf32>
    %cst_51 = arith.constant dense<0.000000e+00> : vector<8xf32>
    %160 = vector.multi_reduction <add>, %159, %cst_51 [1] : vector<8x8xf32> to vector<8xf32>
    %161 = vector.shape_cast %160 : vector<8xf32> to vector<8x1xf32>
    %162 = arith.truncf %159 : vector<8x8xf32> to vector<8x8xbf16>
    %cst_52 = arith.constant dense<0.000000e+00> : vector<8x8xf32>
    %163 = tpu.matmul %162, %134, %cst_52 {dimension_numbers = #tpu.dot_dimension_numbers<[1], [0], [0], [1], [0, 0, 1, 1], [], []>} : vector<8x8xbf16>, vector<8x8xbf16>, vector<8x8xf32> -> vector<8x8xf32>
    %164 = tpu.reciprocal %161 {approx = true} : vector<8x1xf32> -> vector<8x1xf32>
    %165 = vector.broadcast %164 : vector<8x1xf32> to vector<8x8xf32>
    %166 = arith.mulf %163, %165 : vector<8x8xf32>
    %167 = vector.extract_strided_slice %6 {offsets = [0, 24], sizes = [8, 8], strides = [1, 1]} : vector<8x32xf32> to vector<8x8xf32>
    %c3 = arith.constant 3 : index
    %c0_53 = arith.constant 0 : index
    %168 = vector.load %arg9[%c3, %c0_53] : memref<4x8xf32, #tpu.memory_space<vmem>>, vector<1x8xf32>
    %169 = vector.broadcast %168 : vector<1x8xf32> to vector<8x8xf32>
    %170 = arith.addf %167, %169 : vector<8x8xf32>
    %171 = arith.truncf %170 : vector<8x8xf32> to vector<8x8xbf16>
    %172 = vector.extract_strided_slice %6 {offsets = [0, 24], sizes = [8, 8], strides = [1, 1]} : vector<8x32xf32> to vector<8x8xf32>
    %c3_54 = arith.constant 3 : index
    %c0_55 = arith.constant 0 : index
    %173 = vector.load %arg10[%c3_54, %c0_55] : memref<4x8xf32, #tpu.memory_space<vmem>>, vector<1x8xf32>
    %174 = vector.broadcast %173 : vector<1x8xf32> to vector<8x8xf32>
    %175 = arith.addf %172, %174 : vector<8x8xf32>
    %176 = arith.truncf %175 : vector<8x8xf32> to vector<8x8xbf16>
    %c0_56 = arith.constant 0 : index
    %c56 = arith.constant 56 : index
    %177 = vector.load %arg14[%c0_56, %c56] : memref<8x96xf32, #tpu.memory_space<vmem>>, vector<8x8xf32>
    %178 = arith.truncf %177 : vector<8x8xf32> to vector<8x8xbf16>
    %c0_57 = arith.constant 0 : index
    %c88 = arith.constant 88 : index
    %179 = vector.load %arg14[%c0_57, %c88] : memref<8x96xf32, #tpu.memory_space<vmem>>, vector<8x8xf32>
    %180 = arith.truncf %179 : vector<8x8xf32> to vector<8x8xbf16>
    %cst_58 = arith.constant dense<0.000000e+00> : vector<8x8xf32>
    %181 = tpu.matmul %171, %178, %cst_58 {dimension_numbers = #tpu.dot_dimension_numbers<[1], [1], [0], [0], [0, 0, 1, 0], [], []>} : vector<8x8xbf16>, vector<8x8xbf16>, vector<8x8xf32> -> vector<8x8xf32>
    %c0_59 = arith.constant 0 : index
    %c24 = arith.constant 24 : index
    %c0_60 = arith.constant 0 : index
    %182 = vector.load %arg8[%c0_59, %c24, %c0_60] : memref<1x32x128xbf16, #tpu.memory_space<vmem>>, vector<1x8x128xbf16>
    %183 = vector.shape_cast %182 : vector<1x8x128xbf16> to vector<8x128xbf16>
    %cst_61 = arith.constant dense<0.000000e+00> : vector<8x128xf32>
    %184 = tpu.matmul %176, %183, %cst_61 {dimension_numbers = #tpu.dot_dimension_numbers<[1], [0], [0], [1], [0, 0, 1, 1], [], []>} : vector<8x8xbf16>, vector<8x128xbf16>, vector<8x128xf32> -> vector<8x128xf32>
    %c127_i32_62 = arith.constant 127 : i32
    %185 = tpu.dynamic_rotate %184 by %c127_i32_62 dim 1 : vector<8x128xf32>, i32 -> vector<8x128xf32>
    %186 = vector.shape_cast %20 : vector<8x1xi1> to vector<8x1xi1>
    %187 = vector.broadcast %186 : vector<8x1xi1> to vector<8x128xi1>
    %188 = arith.select %187, %185, %184 : vector<8x128xi1>, vector<8x128xf32>
    %c126_i32_63 = arith.constant 126 : i32
    %189 = tpu.dynamic_rotate %188 by %c126_i32_63 dim 1 : vector<8x128xf32>, i32 -> vector<8x128xf32>
    %190 = vector.shape_cast %24 : vector<8x1xi1> to vector<8x1xi1>
    %191 = vector.broadcast %190 : vector<8x1xi1> to vector<8x128xi1>
    %192 = arith.select %191, %189, %188 : vector<8x128xi1>, vector<8x128xf32>
    %c124_i32_64 = arith.constant 124 : i32
    %193 = tpu.dynamic_rotate %192 by %c124_i32_64 dim 1 : vector<8x128xf32>, i32 -> vector<8x128xf32>
    %194 = vector.shape_cast %28 : vector<8x1xi1> to vector<8x1xi1>
    %195 = vector.broadcast %194 : vector<8x1xi1> to vector<8x128xi1>
    %196 = arith.select %195, %193, %192 : vector<8x128xi1>, vector<8x128xf32>
    %197 = vector.extract_strided_slice %196 {offsets = [0, 0], sizes = [8, 8], strides = [1, 1]} : vector<8x128xf32> to vector<8x8xf32>
    %198 = arith.addf %181, %197 : vector<8x8xf32>
    %199 = vector.broadcast %13 : vector<1x8xf32> to vector<8x8xf32>
    %200 = arith.addf %198, %199 : vector<8x8xf32>
    %cst_65 = arith.constant dense<0xFF800000> : vector<8xf32>
    %201 = vector.multi_reduction <maximumf>, %200, %cst_65 [1] : vector<8x8xf32> to vector<8xf32>
    %202 = vector.shape_cast %201 : vector<8xf32> to vector<8x1xf32>
    %203 = vector.broadcast %202 : vector<8x1xf32> to vector<8x8xf32>
    %204 = arith.subf %200, %203 : vector<8x8xf32>
    %205 = math.exp %204 : vector<8x8xf32>
    %cst_66 = arith.constant dense<0.000000e+00> : vector<8xf32>
    %206 = vector.multi_reduction <add>, %205, %cst_66 [1] : vector<8x8xf32> to vector<8xf32>
    %207 = vector.shape_cast %206 : vector<8xf32> to vector<8x1xf32>
    %208 = arith.truncf %205 : vector<8x8xf32> to vector<8x8xbf16>
    %cst_67 = arith.constant dense<0.000000e+00> : vector<8x8xf32>
    %209 = tpu.matmul %208, %180, %cst_67 {dimension_numbers = #tpu.dot_dimension_numbers<[1], [0], [0], [1], [0, 0, 1, 1], [], []>} : vector<8x8xbf16>, vector<8x8xbf16>, vector<8x8xf32> -> vector<8x8xf32>
    %210 = tpu.reciprocal %207 {approx = true} : vector<8x1xf32> -> vector<8x1xf32>
    %211 = vector.broadcast %210 : vector<8x1xf32> to vector<8x8xf32>
    %212 = arith.mulf %209, %211 : vector<8x8xf32>
    %213 = tpu.concatenate %74, %120, %166, %212 in 1 : vector<8x8xf32>, vector<8x8xf32>, vector<8x8xf32>, vector<8x8xf32> -> vector<8x32xf32>
    %214 = arith.truncf %213 : vector<8x32xf32> to vector<8x32xbf16>
    %c0_68 = arith.constant 0 : index
    %c0_69 = arith.constant 0 : index
    %215 = vector.load %arg11[%c0_68, %c0_69] : memref<32x32xbf16, #tpu.memory_space<vmem>>, vector<32x32xbf16>
    %cst_70 = arith.constant dense<0.000000e+00> : vector<8x32xf32>
    %216 = tpu.matmul %214, %215, %cst_70 {dimension_numbers = #tpu.dot_dimension_numbers<[1], [0], [0], [1], [0, 0, 1, 1], [], []>} : vector<8x32xbf16>, vector<32x32xbf16>, vector<8x32xf32> -> vector<8x32xf32>
    %c0_71 = arith.constant 0 : index
    %c0_72 = arith.constant 0 : index
    %217 = vector.load %arg12[%c0_71, %c0_72] : memref<1x32xf32, #tpu.memory_space<vmem>>, vector<1x32xf32>
    %218 = vector.broadcast %217 : vector<1x32xf32> to vector<8x32xf32>
    %219 = arith.addf %216, %218 : vector<8x32xf32>
    %c0_73 = arith.constant 0 : index
    %c0_74 = arith.constant 0 : index
    %c0_75 = arith.constant 0 : index
    %220 = vector.load %arg13[%c0_73, %c0_74, %c0_75] : memref<1x8x32xf32, #tpu.memory_space<vmem>>, vector<1x8x32xf32>
    %221 = vector.shape_cast %220 : vector<1x8x32xf32> to vector<8x32xf32>
    %222 = vector.shape_cast %219 : vector<8x32xf32> to vector<1x8x32xf32>
    tpu.vector_store %arg13[%c0_73, %c0_74, %c0_75], %222 {strides = array<i32>} : memref<1x8x32xf32, #tpu.memory_space<vmem>>, vector<1x8x32xf32>,
    return
  }
  func.func @transform_0(%arg0: i32, %arg1: i32) -> (i32, i32, i32) {
    %c0_i32 = arith.constant 0 : i32
    %c0_i32_0 = arith.constant 0 : i32
    %c0_i32_1 = arith.constant 0 : i32
    return %arg0, %c0_i32, %c0_i32_0 : i32, i32, i32
  }
  func.func @transform_1(%arg0: i32, %arg1: i32) -> (i32, i32, i32) {
    %c0_i32 = arith.constant 0 : i32
    %c0_i32_0 = arith.constant 0 : i32
    %c0_i32_1 = arith.constant 0 : i32
    return %arg0, %c0_i32, %c0_i32_0 : i32, i32, i32
  }
  func.func @transform_2(%arg0: i32, %arg1: i32) -> (i32, i32) {
    %c0_i32 = arith.constant 0 : i32
    %c0_i32_0 = arith.constant 0 : i32
    %c0_i32_1 = arith.constant 0 : i32
    return %c0_i32, %c0_i32_0 : i32, i32
  }
  func.func @transform_3(%arg0: i32, %arg1: i32) -> (i32, i32) {
    %c0_i32 = arith.constant 0 : i32
    %c0_i32_0 = arith.constant 0 : i32
    %c0_i32_1 = arith.constant 0 : i32
    return %c0_i32, %c0_i32_0 : i32, i32
  }
  func.func @transform_4(%arg0: i32, %arg1: i32) -> (i32, i32) {
    %c0_i32 = arith.constant 0 : i32
    %c0_i32_0 = arith.constant 0 : i32
    %c0_i32_1 = arith.constant 0 : i32
    return %c0_i32, %c0_i32_0 : i32, i32
  }
  func.func @transform_5(%arg0: i32, %arg1: i32) -> (i32, i32) {
    %c0_i32 = arith.constant 0 : i32
    %c0_i32_0 = arith.constant 0 : i32
    %c0_i32_1 = arith.constant 0 : i32
    return %c0_i32, %c0_i32_0 : i32, i32
  }
  func.func @transform_6(%arg0: i32, %arg1: i32) -> (i32, i32, i32) {
    %c0_i32 = arith.constant 0 : i32
    %c0_i32_0 = arith.constant 0 : i32
    %c0_i32_1 = arith.constant 0 : i32
    return %arg1, %c0_i32, %c0_i32_0 : i32, i32, i32
  }
  func.func @transform_7(%arg0: i32, %arg1: i32) -> (i32, i32) {
    %c0_i32 = arith.constant 0 : i32
    %c0_i32_0 = arith.constant 0 : i32
    %c0_i32_1 = arith.constant 0 : i32
    return %c0_i32, %c0_i32_0 : i32, i32
  }
  func.func @transform_8(%arg0: i32, %arg1: i32) -> (i32, i32) {
    %c0_i32 = arith.constant 0 : i32
    %c0_i32_0 = arith.constant 0 : i32
    %c0_i32_1 = arith.constant 0 : i32
    return %c0_i32, %c0_i32_0 : i32, i32
  }
  func.func @transform_9(%arg0: i32, %arg1: i32) -> (i32, i32) {
    %c0_i32 = arith.constant 0 : i32
    %c0_i32_0 = arith.constant 0 : i32
    %c0_i32_1 = arith.constant 0 : i32
    return %c0_i32, %c0_i32_0 : i32, i32
  }
  func.func @transform_10(%arg0: i32, %arg1: i32) -> (i32, i32) {
    %c0_i32 = arith.constant 0 : i32
    %c0_i32_0 = arith.constant 0 : i32
    %c0_i32_1 = arith.constant 0 : i32
    return %c0_i32, %c0_i32_0 : i32, i32
  }
  func.func @transform_11(%arg0: i32, %arg1: i32) -> (i32, i32, i32) {
    %c0_i32 = arith.constant 0 : i32
    %c0_i32_0 = arith.constant 0 : i32
    return %arg0, %arg1, %c0_i32 : i32, i32, i32
  }
}

</mosaic_0001>

<llo_original>
// kernel: tpu_custom_call.1
$region0: #{tpu_custom_call.1}
  #allocation0 [shape = 'u32[]', space=smem, size = 0x4, offset = 0x4, fixed_abs, tag = 'smem constant byte address 0x4 - core index']
  #allocation1 [shape = 'u32[144,128]{1,0:T(1,128)}', space=vmem, size = 0x12000, scoped, tag = 'internal scratch']
  #allocation2 [shape = 'f32[8,96]{1,0:T(8,128)}', space=vmem, size = 0x1000, scoped, tag = 'scratch operand']
  %s0 = inlined_call_operand.hbm [shape: f32[2,8,32], index: 0, kind: input, shape index: {}]
  %s1 = inlined_call_operand.hbm [shape: f32[2,1,8], index: 1, kind: input, shape index: {}]
  %s2 = inlined_call_operand.hbm [shape: f32[1,32], index: 2, kind: input, shape index: {}]
  %s3 = inlined_call_operand.hbm [shape: f32[1,32], index: 3, kind: input, shape index: {}]
  %s4 = inlined_call_operand.hbm [shape: bf16[32,96], index: 4, kind: input, shape index: {}]
  %s5 = inlined_call_operand.hbm [shape: f32[1,96], index: 5, kind: input, shape index: {}]
  %s6 = inlined_call_operand.hbm [shape: bf16[1,32,128], index: 6, kind: input, shape index: {}]
  %s7 = inlined_call_operand.hbm [shape: f32[4,8], index: 7, kind: input, shape index: {}]
  %s8 = inlined_call_operand.hbm [shape: f32[4,8], index: 8, kind: input, shape index: {}]
  %s9 = inlined_call_operand.vmem [shape: bf16[32,32], index: 9, kind: input, shape index: {}]
  %s10 = inlined_call_operand.vmem [shape: f32[1,32], index: 10, kind: input, shape index: {}]
  %s11 = inlined_call_operand.hbm [shape: f32[2,8,32], index: 11, kind: output, shape index: {}]
  %s12 = sld [smem:[#allocation0]]
  $region117: #{tpu_custom_call.1} parent=0
    _
  %s14 = ssub.s32 1, %s12
  %s15 = scalar_select 0, %s14, %s12
  $region1: #{tpu_custom_call.1} parent=0
    #allocation3 [shape = 'u8[8192]{0}', space=vmem, size = 0x2000, scoped, tag = 'input window, operand 0']
    #allocation4 [shape = 's32[2]{0}', space=sflag, size = 0x8, scoped, tag = 'scoped memory for tpu_custom_call.1']
    #allocation5 [shape = 's32[2]{0}', space=sflag, size = 0x8, scoped, tag = 'scoped memory for tpu_custom_call.1']
    #allocation6 [shape = 'u8[1024]{0}', space=vmem, size = 0x400, scoped, tag = 'input window, operand 1']
    #allocation7 [shape = 's32[2]{0}', space=sflag, size = 0x8, scoped, tag = 'scoped memory for tpu_custom_call.1']
    #allocation8 [shape = 'u8[512]{0}', space=vmem, size = 0x400, scoped, tag = 'input window, operand 2, single buffered']
    #allocation9 [shape = 'u8[512]{0}', space=vmem, size = 0x400, scoped, tag = 'input window, operand 3, single buffered']
    #allocation10 [shape = 's32[1]{0}', space=sflag, size = 0x4, scoped, tag = 'scoped memory for tpu_custom_call.1']
    #allocation11 [shape = 'u8[8192]{0}', space=vmem, size = 0x2000, scoped, tag = 'input window, operand 4, single buffered']
    #allocation12 [shape = 'u8[512]{0}', space=vmem, size = 0x400, scoped, tag = 'input window, operand 5, single buffered']
    #allocation13 [shape = 's32[1]{0}', space=sflag, size = 0x4, scoped, tag = 'scoped memory for tpu_custom_call.1']
    #allocation14 [shape = 'u8[8192]{0}', space=vmem, size = 0x2000, scoped, tag = 'input window, operand 6, single buffered']
    #allocation15 [shape = 'u8[2048]{0}', space=vmem, size = 0x800, scoped, tag = 'input window, operand 7, single buffered']
    #allocation16 [shape = 's32[1]{0}', space=sflag, size = 0x4, scoped, tag = 'scoped memory for tpu_custom_call.1']
    #allocation17 [shape = 'u8[2048]{0}', space=vmem, size = 0x800, scoped, tag = 'input window, operand 8, single buffered']
    #allocation18 [shape = 'u8[8192]{0}', space=vmem, size = 0x2000, scoped, tag = 'output window, operand 0']
    %16 = vsyncpa [#allocation4], 0
    %s17 = scalar_lea.sflag [#allocation4], 1
    %18 = vsyncpa %s17, 0
    %19 = vsyncpa [#allocation7], 0
    %s20 = scalar_lea.sflag [#allocation7], 1
    %21 = vsyncpa %s20, 0
    %22 = vsyncpa [#allocation10], 0
    %23 = vsyncpa [#allocation13], 0
    %24 = vsyncpa [#allocation16], 0
    %25 = vsyncpa [#allocation5], 0
    %s26 = scalar_lea.sflag [#allocation5], 1
    %27 = vsyncpa %s26, 0
    loop: start=0, step=1, limit=4
    $region2: #{tpu_custom_call.1} parent=1 // loop_pre_header
      _
    $region3: #{tpu_custom_call.1} parent=1 // loop_header
      %s29 = sphi 0, %s33
      %p30 = scmp.ge.s32.totalorder %s29, 4
      %s36 = sphi 0, %s48
      %s37 = sphi 0, %s44
      %s38 = sphi 0, %s36
      %s39 = sphi 0, %s37
      %s40 = sphi 0, %s38
      %s41 = sphi 0, %s39
      %s51 = sphi 0, %s53
      %s54 = sphi 0, %s51
      %s55 = sphi 0, %s54
      %s71 = sphi 0, %s55
      %s77 = sphi 0, %s79
      %s80 = sphi 0, %s77
      %s81 = sphi 0, %s80
      %s97 = sphi 0, %s81
      %s101 = sphi 0, %s101
      %s103 = sphi 0, %s101
      %s104 = sphi 0, %s103
      %s118 = sphi 0, %s104
      %s122 = sphi 0, %s122
      %s124 = sphi 0, %s122
      %s125 = sphi 0, %s124
      %s139 = sphi 0, %s125
      %s143 = sphi 0, %s143
      %s145 = sphi 0, %s143
      %s146 = sphi 0, %s145
      %s160 = sphi 0, %s146
      %s164 = sphi 0, %s164
      %s166 = sphi 0, %s164
      %s167 = sphi 0, %s166
      %s181 = sphi 0, %s167
      %s187 = sphi 0, %s189
      %s190 = sphi 0, %s187
      %s191 = sphi 0, %s190
      %s207 = sphi 0, %s191
      %s211 = sphi 0, %s211
      %s213 = sphi 0, %s211
      %s214 = sphi 0, %s213
      %s228 = sphi 0, %s214
      %s232 = sphi 0, %s232
      %s234 = sphi 0, %s232
      %s235 = sphi 0, %s234
      %s249 = sphi 0, %s235
      %s253 = sphi 0, %s253
      %s255 = sphi 0, %s253
      %s256 = sphi 0, %s255
      %s270 = sphi 0, %s256
      %s274 = sphi 0, %s274
      %s276 = sphi 0, %s274
      %s277 = sphi 0, %s276
      %s291 = sphi 0, %s277
      %s299 = sphi 0, %s301
      %s302 = sphi 0, %s299
      %s303 = sphi 0, %s302
      %s319 = sphi 0, %s303
    $region4: #{tpu_custom_call.1} parent=1 // loop_header_branch
      %32 = sbr.rel (%p30) target = $region8
    $region5: #{tpu_custom_call.1} parent=1 // loop_body
      %s34 = ssub.s32 %s29, 1
      %s35 = ssub.s32 %s29, 2
      %s42 = sadd.s32 1, %s37
      %p43 = scmp.ge.s32.totalorder %s42, 1
      %s44 = scalar_select %p43, 0, %s42
      %s45 = sadd.s32 1, %s36
      %s46 = scalar_select %p43, %s45, %s36
      %p47 = scmp.ge.s32.totalorder %s46, 2
      %s48 = scalar_select %p47, 0, %s46
      %s49 = ssub.s32 %s36, %s48
      %p50 = scmp.eq.s32.totalorder %s49, 0
      %s52 = sadd.s32 %s51, 1
      %s53 = scalar_select %p50, %s51, %s52
      %p56 = pneg %p50
      %p57 = scmp.eq.s32.totalorder %s29, 1
      %p58 = por %p56, %p57
      %p59 = scmp.ne.s32.totalorder %s51, %s54
      %p60 = scmp.eq.s32.totalorder %s29, 0
      %p61 = por %p59, %p60
      %p62 = scmp.ne.s32.totalorder %s51, %s54
      %p63 = scmp.eq.s32.totalorder %s34, 1
      %p64 = por %p62, %p63
      %p65 = scmp.ne.s32.totalorder %s54, %s55
      %p66 = scmp.eq.s32.totalorder %s34, 0
      %p67 = por %p65, %p66
      %p68 = scmp.ne.s32.totalorder %s54, %s55
      %p69 = scmp.eq.s32.totalorder %s35, 1
      %p70 = por %p68, %p69
      %p72 = scmp.ne.s32.totalorder %s55, %s71
      %p73 = scmp.eq.s32.totalorder %s35, 0
      %p74 = por %p72, %p73
      %s75 = ssub.s32 %s36, %s48
      %p76 = scmp.eq.s32.totalorder %s75, 0
      %s78 = sadd.s32 %s77, 1
      %s79 = scalar_select %p76, %s77, %s78
      %p82 = pneg %p76
      %p83 = scmp.eq.s32.totalorder %s29, 1
      %p84 = por %p82, %p83
      %p85 = scmp.ne.s32.totalorder %s77, %s80
      %p86 = scmp.eq.s32.totalorder %s29, 0
      %p87 = por %p85, %p86
      %p88 = scmp.ne.s32.totalorder %s77, %s80
      %p89 = scmp.eq.s32.totalorder %s34, 1
      %p90 = por %p88, %p89
      %p91 = scmp.ne.s32.totalorder %s80, %s81
      %p92 = scmp.eq.s32.totalorder %s34, 0
      %p93 = por %p91, %p92
      %p94 = scmp.ne.s32.totalorder %s80, %s81
      %p95 = scmp.eq.s32.totalorder %s35, 1
      %p96 = por %p94, %p95
      %p98 = scmp.ne.s32.totalorder %s81, %s97
      %p99 = scmp.eq.s32.totalorder %s35, 0
      %p100 = por %p98, %p99
      %s102 = sadd.s32 %s101, 1
      %p105 = scmp.eq.s32.totalorder %s29, 1
      %p106 = scmp.ne.s32.totalorder %s101, %s103
      %p107 = scmp.eq.s32.totalorder %s29, 0
      %p108 = por %p106, %p107
      %p109 = scmp.ne.s32.totalorder %s101, %s103
      %p110 = scmp.eq.s32.totalorder %s34, 1
      %p111 = por %p109, %p110
      %p112 = scmp.ne.s32.totalorder %s103, %s104
      %p113 = scmp.eq.s32.totalorder %s34, 0
      %p114 = por %p112, %p113
      %p115 = scmp.ne.s32.totalorder %s103, %s104
      %p116 = scmp.eq.s32.totalorder %s35, 1
      %p117 = por %p115, %p116
      %p119 = scmp.ne.s32.totalorder %s104, %s118
      %p120 = scmp.eq.s32.totalorder %s35, 0
      %p121 = por %p119, %p120
      %s123 = sadd.s32 %s122, 1
      %p126 = scmp.eq.s32.totalorder %s29, 1
      %p127 = scmp.ne.s32.totalorder %s122, %s124
      %p128 = scmp.eq.s32.totalorder %s29, 0
      %p129 = por %p127, %p128
      %p130 = scmp.ne.s32.totalorder %s122, %s124
      %p131 = scmp.eq.s32.totalorder %s34, 1
      %p132 = por %p130, %p131
      %p133 = scmp.ne.s32.totalorder %s124, %s125
      %p134 = scmp.eq.s32.totalorder %s34, 0
      %p135 = por %p133, %p134
      %p136 = scmp.ne.s32.totalorder %s124, %s125
      %p137 = scmp.eq.s32.totalorder %s35, 1
      %p138 = por %p136, %p137
      %p140 = scmp.ne.s32.totalorder %s125, %s139
      %p141 = scmp.eq.s32.totalorder %s35, 0
      %p142 = por %p140, %p141
      %s144 = sadd.s32 %s143, 1
      %p147 = scmp.eq.s32.totalorder %s29, 1
      %p148 = scmp.ne.s32.totalorder %s143, %s145
      %p149 = scmp.eq.s32.totalorder %s29, 0
      %p150 = por %p148, %p149
      %p151 = scmp.ne.s32.totalorder %s143, %s145
      %p152 = scmp.eq.s32.totalorder %s34, 1
      %p153 = por %p151, %p152
      %p154 = scmp.ne.s32.totalorder %s145, %s146
      %p155 = scmp.eq.s32.totalorder %s34, 0
      %p156 = por %p154, %p155
      %p157 = scmp.ne.s32.totalorder %s145, %s146
      %p158 = scmp.eq.s32.totalorder %s35, 1
      %p159 = por %p157, %p158
      %p161 = scmp.ne.s32.totalorder %s146, %s160
      %p162 = scmp.eq.s32.totalorder %s35, 0
      %p163 = por %p161, %p162
      %s165 = sadd.s32 %s164, 1
      %p168 = scmp.eq.s32.totalorder %s29, 1
      %p169 = scmp.ne.s32.totalorder %s164, %s166
      %p170 = scmp.eq.s32.totalorder %s29, 0
      %p171 = por %p169, %p170
      %p172 = scmp.ne.s32.totalorder %s164, %s166
      %p173 = scmp.eq.s32.totalorder %s34, 1
      %p174 = por %p172, %p173
      %p175 = scmp.ne.s32.totalorder %s166, %s167
      %p176 = scmp.eq.s32.totalorder %s34, 0
      %p177 = por %p175, %p176
      %p178 = scmp.ne.s32.totalorder %s166, %s167
      %p179 = scmp.eq.s32.totalorder %s35, 1
      %p180 = por %p178, %p179
      %p182 = scmp.ne.s32.totalorder %s167, %s181
      %p183 = scmp.eq.s32.totalorder %s35, 0
      %p184 = por %p182, %p183
      %s185 = ssub.s32 %s37, %s44
      %p186 = scmp.eq.s32.totalorder %s185, 0
      %s188 = sadd.s32 %s187, 1
      %s189 = scalar_select %p186, %s187, %s188
      %p192 = pneg %p186
      %p193 = scmp.eq.s32.totalorder %s29, 1
      %p194 = por %p192, %p193
      %p195 = scmp.ne.s32.totalorder %s187, %s190
      %p196 = scmp.eq.s32.totalorder %s29, 0
      %p197 = por %p195, %p196
      %p198 = scmp.ne.s32.totalorder %s187, %s190
      %p199 = scmp.eq.s32.totalorder %s34, 1
      %p200 = por %p198, %p199
      %p201 = scmp.ne.s32.totalorder %s190, %s191
      %p202 = scmp.eq.s32.totalorder %s34, 0
      %p203 = por %p201, %p202
      %p204 = scmp.ne.s32.totalorder %s190, %s191
      %p205 = scmp.eq.s32.totalorder %s35, 1
      %p206 = por %p204, %p205
      %p208 = scmp.ne.s32.totalorder %s191, %s207
      %p209 = scmp.eq.s32.totalorder %s35, 0
      %p210 = por %p208, %p209
      %s212 = sadd.s32 %s211, 1
      %p215 = scmp.eq.s32.totalorder %s29, 1
      %p216 = scmp.ne.s32.totalorder %s211, %s213
      %p217 = scmp.eq.s32.totalorder %s29, 0
      %p218 = por %p216, %p217
      %p219 = scmp.ne.s32.totalorder %s211, %s213
      %p220 = scmp.eq.s32.totalorder %s34, 1
      %p221 = por %p219, %p220
      %p222 = scmp.ne.s32.totalorder %s213, %s214
      %p223 = scmp.eq.s32.totalorder %s34, 0
      %p224 = por %p222, %p223
      %p225 = scmp.ne.s32.totalorder %s213, %s214
      %p226 = scmp.eq.s32.totalorder %s35, 1
      %p227 = por %p225, %p226
      %p229 = scmp.ne.s32.totalorder %s214, %s228
      %p230 = scmp.eq.s32.totalorder %s35, 0
      %p231 = por %p229, %p230
      %s233 = sadd.s32 %s232, 1
      %p236 = scmp.eq.s32.totalorder %s29, 1
      %p237 = scmp.ne.s32.totalorder %s232, %s234
      %p238 = scmp.eq.s32.totalorder %s29, 0
      %p239 = por %p237, %p238
      %p240 = scmp.ne.s32.totalorder %s232, %s234
      %p241 = scmp.eq.s32.totalorder %s34, 1
      %p242 = por %p240, %p241
      %p243 = scmp.ne.s32.totalorder %s234, %s235
      %p244 = scmp.eq.s32.totalorder %s34, 0
      %p245 = por %p243, %p244
      %p246 = scmp.ne.s32.totalorder %s234, %s235
      %p247 = scmp.eq.s32.totalorder %s35, 1
      %p248 = por %p246, %p247
      %p250 = scmp.ne.s32.totalorder %s235, %s249
      %p251 = scmp.eq.s32.totalorder %s35, 0
      %p252 = por %p250, %p251
      %s254 = sadd.s32 %s253, 1
      %p257 = scmp.eq.s32.totalorder %s29, 1
      %p258 = scmp.ne.s32.totalorder %s253, %s255
      %p259 = scmp.eq.s32.totalorder %s29, 0
      %p260 = por %p258, %p259
      %p261 = scmp.ne.s32.totalorder %s253, %s255
      %p262 = scmp.eq.s32.totalorder %s34, 1
      %p263 = por %p261, %p262
      %p264 = scmp.ne.s32.totalorder %s255, %s256
      %p265 = scmp.eq.s32.totalorder %s34, 0
      %p266 = por %p264, %p265
      %p267 = scmp.ne.s32.totalorder %s255, %s256
      %p268 = scmp.eq.s32.totalorder %s35, 1
      %p269 = por %p267, %p268
      %p271 = scmp.ne.s32.totalorder %s256, %s270
      %p272 = scmp.eq.s32.totalorder %s35, 0
      %p273 = por %p271, %p272
      %s275 = sadd.s32 %s274, 1
      %p278 = scmp.eq.s32.totalorder %s29, 1
      %p279 = scmp.ne.s32.totalorder %s274, %s276
      %p280 = scmp.eq.s32.totalorder %s29, 0
      %p281 = por %p279, %p280
      %p282 = scmp.ne.s32.totalorder %s274, %s276
      %p283 = scmp.eq.s32.totalorder %s34, 1
      %p284 = por %p282, %p283
      %p285 = scmp.ne.s32.totalorder %s276, %s277
      %p286 = scmp.eq.s32.totalorder %s34, 0
      %p287 = por %p285, %p286
      %p288 = scmp.ne.s32.totalorder %s276, %s277
      %p289 = scmp.eq.s32.totalorder %s35, 1
      %p290 = por %p288, %p289
      %p292 = scmp.ne.s32.totalorder %s277, %s291
      %p293 = scmp.eq.s32.totalorder %s35, 0
      %p294 = por %p292, %p293
      %s295 = ssub.s32 %s36, %s48
      %s296 = ssub.s32 %s37, %s44
      %s297 = sor.u32 %s295, %s296
      %p298 = scmp.eq.s32.totalorder %s297, 0
      %s300 = sadd.s32 %s299, 1
      %s301 = scalar_select %p298, %s299, %s300
      %p304 = pneg %p298
      %p305 = scmp.eq.s32.totalorder %s29, 1
      %p306 = por %p304, %p305
      %p307 = scmp.ne.s32.totalorder %s299, %s302
      %p308 = scmp.eq.s32.totalorder %s29, 0
      %p309 = por %p307, %p308
      %p310 = scmp.ne.s32.totalorder %s299, %s302
      %p311 = scmp.eq.s32.totalorder %s34, 1
      %p312 = por %p310, %p311
      %p313 = scmp.ne.s32.totalorder %s302, %s303
      %p314 = scmp.eq.s32.totalorder %s34, 0
      %p315 = por %p313, %p314
      %p316 = scmp.ne.s32.totalorder %s302, %s303
      %p317 = scmp.eq.s32.totalorder %s35, 1
      %p318 = por %p316, %p317
      %p320 = scmp.ne.s32.totalorder %s303, %s319
      %p321 = scmp.eq.s32.totalorder %s35, 0
      %p322 = por %p320, %p321
      %p323 = scmp.le.s32.totalorder 1, %s29
      %p324 = scmp.lt.s32.totalorder %s29, 3
      %p325 = pnand %p323, %p324
      %p326 = pneg %p325
      // Predicated region
      $region9: #{tpu_custom_call.1} parent=5 // pred_check
        _
      $region10: #{tpu_custom_call.1} parent=5 // pred_check_branch
        %328 = sbr.rel (%p325) target = $region12
      $region11: #{tpu_custom_call.1} parent=5 // pred_region
        %s329 = ssub.s32 %s29, 1
        // Predicated region
        $region13: #{tpu_custom_call.1} parent=11 // pred_check
          %p330 = pneg %p114
        $region14: #{tpu_custom_call.1} parent=11 // pred_check_branch
          %332 = sbr.rel (%p330) target = $region16
        $region15: #{tpu_custom_call.1} parent=11 // pred_region
          %s334 = ssub.s32 16, 16
          %335 = vsyncadd [#allocation7], %s334
          %s337 = sshll.u32 [#allocation8], 4
          %s338 = int_to_ptr.vmem [resolvable:$true] %s337
          %340 = dma.hbm_to_vmem [thread:$0]  %s2, 16, %s338, [#allocation7]
        $region16: #{tpu_custom_call.1} parent=11 // pred_fallthru
          _
        // Predicated region
        $region17: #{tpu_custom_call.1} parent=11 // pred_check
          %p341 = pneg %p135
        $region18: #{tpu_custom_call.1} parent=11 // pred_check_branch
          %343 = sbr.rel (%p341) target = $region20
        $region19: #{tpu_custom_call.1} parent=11 // pred_region
          %s345 = ssub.s32 16, 16
          %346 = vsyncadd [#allocation10], %s345
          %s348 = sshll.u32 [#allocation9], 4
          %s349 = int_to_ptr.vmem [resolvable:$true] %s348
          %351 = dma.hbm_to_vmem [thread:$0]  %s3, 16, %s349, [#allocation10]
        $region20: #{tpu_custom_call.1} parent=11 // pred_fallthru
          _
        // Predicated region
        $region21: #{tpu_custom_call.1} parent=11 // pred_check
          %p352 = pneg %p156
        $region22: #{tpu_custom_call.1} parent=11 // pred_check_branch
          %354 = sbr.rel (%p352) target = $region24
        $region23: #{tpu_custom_call.1} parent=11 // pred_region
          %s356 = ssub.s32 256, 256
          %357 = vsyncadd [#allocation10], %s356
          %s358 = sshll.u32 [#allocation11], 4
          %s359 = int_to_ptr.vmem [resolvable:$true] %s358
          %364 = dma.hbm_to_vmem [thread:$0]  %s4, 256, %s359, [#allocation10], 64, 64, 4
        $region24: #{tpu_custom_call.1} parent=11 // pred_fallthru
          _
        // Predicated region
        $region25: #{tpu_custom_call.1} parent=11 // pred_check
          %p365 = pneg %p177
        $region26: #{tpu_custom_call.1} parent=11 // pred_check_branch
          %367 = sbr.rel (%p365) target = $region28
        $region27: #{tpu_custom_call.1} parent=11 // pred_region
          %s369 = ssub.s32 16, 16
          %370 = vsyncadd [#allocation13], %s369
          %s372 = sshll.u32 [#allocation12], 4
          %s373 = int_to_ptr.vmem [resolvable:$true] %s372
          %375 = dma.hbm_to_vmem [thread:$0]  %s5, 16, %s373, [#allocation13]
        $region28: #{tpu_custom_call.1} parent=11 // pred_fallthru
          _
        // Predicated region
        $region29: #{tpu_custom_call.1} parent=11 // pred_check
          %p376 = pneg %p203
        $region30: #{tpu_custom_call.1} parent=11 // pred_check_branch
          %378 = sbr.rel (%p376) target = $region32
        $region31: #{tpu_custom_call.1} parent=11 // pred_region
          %s380 = ssub.s32 256, 256
          %381 = vsyncadd [#allocation13], %s380
          %s382 = smul.addr %s39, 4
          %s383 = smul.addr %s382, 64
          %s384 = scalar_lea.hbm %s6, %s383
          %s385 = sshll.u32 [#allocation14], 4
          %s386 = int_to_ptr.vmem [resolvable:$true] %s385
          %391 = dma.hbm_to_vmem [thread:$0]  %s384, 256, %s386, [#allocation13], 64, 64, 4
        $region32: #{tpu_custom_call.1} parent=11 // pred_fallthru
          _
        // Predicated region
        $region33: #{tpu_custom_call.1} parent=11 // pred_check
          %p392 = pneg %p224
        $region34: #{tpu_custom_call.1} parent=11 // pred_check_branch
          %394 = sbr.rel (%p392) target = $region36
        $region35: #{tpu_custom_call.1} parent=11 // pred_region
          %s396 = ssub.s32 64, 64
          %397 = vsyncadd [#allocation16], %s396
          %s399 = sshll.u32 [#allocation15], 4
          %s400 = int_to_ptr.vmem [resolvable:$true] %s399
          %402 = dma.hbm_to_vmem [thread:$0]  %s7, 64, %s400, [#allocation16]
        $region36: #{tpu_custom_call.1} parent=11 // pred_fallthru
          _
        // Predicated region
        $region37: #{tpu_custom_call.1} parent=11 // pred_check
          %p403 = pneg %p245
        $region38: #{tpu_custom_call.1} parent=11 // pred_check_branch
          %405 = sbr.rel (%p403) target = $region40
        $region39: #{tpu_custom_call.1} parent=11 // pred_region
          %s407 = ssub.s32 64, 64
          %408 = vsyncadd [#allocation16], %s407
          %s410 = sshll.u32 [#allocation17], 4
          %s411 = int_to_ptr.vmem [resolvable:$true] %s410
          %413 = dma.hbm_to_vmem [thread:$0]  %s8, 64, %s411, [#allocation16]
        $region40: #{tpu_custom_call.1} parent=11 // pred_fallthru
          _
        // Predicated region
        $region41: #{tpu_custom_call.1} parent=11 // pred_check
          %p414 = pneg %p266
        $region42: #{tpu_custom_call.1} parent=11 // pred_check_branch
          %416 = sbr.rel (%p414) target = $region44
        $region43: #{tpu_custom_call.1} parent=11 // pred_region
          _
        $region44: #{tpu_custom_call.1} parent=11 // pred_fallthru
          _
        // Predicated region
        $region45: #{tpu_custom_call.1} parent=11 // pred_check
          %p417 = pneg %p287
        $region46: #{tpu_custom_call.1} parent=11 // pred_check_branch
          %419 = sbr.rel (%p417) target = $region48
        $region47: #{tpu_custom_call.1} parent=11 // pred_region
          _
        $region48: #{tpu_custom_call.1} parent=11 // pred_fallthru
          _
      $region12: #{tpu_custom_call.1} parent=5 // pred_fallthru
        _
      %p420 = scmp.lt.s32.totalorder %s29, 2
      // Predicated region
      $region49: #{tpu_custom_call.1} parent=5 // pred_check
        %p421 = pneg %p420
      $region50: #{tpu_custom_call.1} parent=5 // pred_check_branch
        %423 = sbr.rel (%p421) target = $region52
      $region51: #{tpu_custom_call.1} parent=5 // pred_region
        // Predicated region
        $region53: #{tpu_custom_call.1} parent=51 // pred_check
          %p424 = pneg %p61
        $region54: #{tpu_custom_call.1} parent=51 // pred_check_branch
          %426 = sbr.rel (%p424) target = $region56
        $region55: #{tpu_custom_call.1} parent=51 // pred_region
          %s427 = sand.u32 %s51, 1
          %s428 = scalar_lea.sflag [#allocation4], %s427
          %s429 = sand.u32 %s51, 1
          %s430 = smul.addr %s429, 8
          %s431 = scalar_lea.vmem [#allocation3], %s430
          %s433 = ssub.s32 128, 128
          %434 = vsyncadd %s428, %s433
          %s435 = smul.addr %s36, 128
          %s436 = scalar_lea.hbm %s0, %s435
          %s438 = sshll.u32 %s431, 4
          %s439 = int_to_ptr.vmem [resolvable:$true] %s438
          %441 = dma.hbm_to_vmem [thread:$0]  %s436, 128, %s439, %s428
        $region56: #{tpu_custom_call.1} parent=51 // pred_fallthru
          _
        // Predicated region
        $region57: #{tpu_custom_call.1} parent=51 // pred_check
          %p442 = pneg %p87
        $region58: #{tpu_custom_call.1} parent=51 // pred_check_branch
          %444 = sbr.rel (%p442) target = $region60
        $region59: #{tpu_custom_call.1} parent=51 // pred_region
          %s445 = sand.u32 %s29, 1
          %s446 = scalar_lea.sflag [#allocation7], %s445
          %s447 = sand.u32 %s77, 1
          %s448 = scalar_lea.vmem [#allocation6], %s447
          %s450 = ssub.s32 16, 16
          %451 = vsyncadd %s446, %s450
          %s452 = smul.addr %s36, 16
          %s453 = scalar_lea.hbm %s1, %s452
          %s455 = sshll.u32 %s448, 4
          %s456 = int_to_ptr.vmem [resolvable:$true] %s455
          %458 = dma.hbm_to_vmem [thread:$0]  %s453, 16, %s456, %s446
        $region60: #{tpu_custom_call.1} parent=51 // pred_fallthru
          _
      $region52: #{tpu_custom_call.1} parent=5 // pred_fallthru
        _
      %p459 = scmp.le.s32.totalorder 1, %s29
      %p460 = scmp.lt.s32.totalorder %s29, 3
      %p461 = pnand %p459, %p460
      %p462 = pneg %p461
      // Predicated region
      $region61: #{tpu_custom_call.1} parent=5 // pred_check
        _
      $region62: #{tpu_custom_call.1} parent=5 // pred_check_branch
        %464 = sbr.rel (%p461) target = $region64
      $region63: #{tpu_custom_call.1} parent=5 // pred_region
        %s465 = ssub.s32 %s29, 1
        %s466 = sand.u32 %s54, 1
        %s467 = scalar_lea.sflag [#allocation4], %s466
        %s468 = sand.u32 %s54, 1
        %s469 = smul.addr %s468, 8
        %s470 = scalar_lea.vmem [#allocation3], %s469
        // Predicated region
        $region65: #{tpu_custom_call.1} parent=63 // pred_check
          %p471 = pneg %p67
        $region66: #{tpu_custom_call.1} parent=63 // pred_check_branch
          %473 = sbr.rel (%p471) target = $region68
        $region67: #{tpu_custom_call.1} parent=63 // pred_region
          %474 = dma.done %s467, 128
        $region68: #{tpu_custom_call.1} parent=63 // pred_fallthru
          _
        %s475 = sand.u32 %s34, 1
        %s476 = scalar_lea.sflag [#allocation7], %s475
        %s477 = sand.u32 %s80, 1
        %s478 = scalar_lea.vmem [#allocation6], %s477
        // Predicated region
        $region69: #{tpu_custom_call.1} parent=63 // pred_check
          %p479 = pneg %p93
        $region70: #{tpu_custom_call.1} parent=63 // pred_check_branch
          %481 = sbr.rel (%p479) target = $region72
        $region71: #{tpu_custom_call.1} parent=63 // pred_region
          %482 = dma.done %s476, 16
        $region72: #{tpu_custom_call.1} parent=63 // pred_fallthru
          _
        // Predicated region
        $region73: #{tpu_custom_call.1} parent=63 // pred_check
          %p483 = pneg %p114
        $region74: #{tpu_custom_call.1} parent=63 // pred_check_branch
          %485 = sbr.rel (%p483) target = $region76
        $region75: #{tpu_custom_call.1} parent=63 // pred_region
          %486 = dma.done [#allocation7], 16
        $region76: #{tpu_custom_call.1} parent=63 // pred_fallthru
          _
        // Predicated region
        $region77: #{tpu_custom_call.1} parent=63 // pred_check
          %p487 = pneg %p135
        $region78: #{tpu_custom_call.1} parent=63 // pred_check_branch
          %489 = sbr.rel (%p487) target = $region80
        $region79: #{tpu_custom_call.1} parent=63 // pred_region
          %490 = dma.done [#allocation10], 16
        $region80: #{tpu_custom_call.1} parent=63 // pred_fallthru
          _
        // Predicated region
        $region81: #{tpu_custom_call.1} parent=63 // pred_check
          %p491 = pneg %p156
        $region82: #{tpu_custom_call.1} parent=63 // pred_check_branch
          %493 = sbr.rel (%p491) target = $region84
        $region83: #{tpu_custom_call.1} parent=63 // pred_region
          %494 = dma.done [#allocation10], 256
        $region84: #{tpu_custom_call.1} parent=63 // pred_fallthru
          _
        // Predicated region
        $region85: #{tpu_custom_call.1} parent=63 // pred_check
          %p495 = pneg %p177
        $region86: #{tpu_custom_call.1} parent=63 // pred_check_branch
          %497 = sbr.rel (%p495) target = $region88
        $region87: #{tpu_custom_call.1} parent=63 // pred_region
          %498 = dma.done [#allocation13], 16
        $region88: #{tpu_custom_call.1} parent=63 // pred_fallthru
          _
        // Predicated region
        $region89: #{tpu_custom_call.1} parent=63 // pred_check
          %p499 = pneg %p203
        $region90: #{tpu_custom_call.1} parent=63 // pred_check_branch
          %501 = sbr.rel (%p499) target = $region92
        $region91: #{tpu_custom_call.1} parent=63 // pred_region
          %502 = dma.done [#allocation13], 256
        $region92: #{tpu_custom_call.1} parent=63 // pred_fallthru
          _
        // Predicated region
        $region93: #{tpu_custom_call.1} parent=63 // pred_check
          %p503 = pneg %p224
        $region94: #{tpu_custom_call.1} parent=63 // pred_check_branch
          %505 = sbr.rel (%p503) target = $region96
        $region95: #{tpu_custom_call.1} parent=63 // pred_region
          %506 = dma.done [#allocation16], 64
        $region96: #{tpu_custom_call.1} parent=63 // pred_fallthru
          _
        // Predicated region
        $region97: #{tpu_custom_call.1} parent=63 // pred_check
          %p507 = pneg %p245
        $region98: #{tpu_custom_call.1} parent=63 // pred_check_branch
          %509 = sbr.rel (%p507) target = $region100
        $region99: #{tpu_custom_call.1} parent=63 // pred_region
          %510 = dma.done [#allocation16], 64
        $region100: #{tpu_custom_call.1} parent=63 // pred_fallthru
          _
        %s511 = sand.u32 %s54, 1
        %s512 = scalar_lea.sflag [#allocation4], %s511
        %s513 = sand.u32 %s54, 1
        %s514 = smul.addr %s513, 8
        %s515 = scalar_lea.vmem [#allocation3], %s514
        %p516 = pneg %p67
        %p517 = pneg %p64
        %s518 = sand.u32 %s34, 1
        %s519 = scalar_lea.sflag [#allocation7], %s518
        %s520 = sand.u32 %s80, 1
        %s521 = scalar_lea.vmem [#allocation6], %s520
        %p522 = pneg %p93
        %p523 = pneg %p90
        %p524 = pneg %p114
        %p525 = pneg %p111
        %p526 = pneg %p135
        %p527 = pneg %p132
        %p528 = pneg %p156
        %p529 = pneg %p153
        %p530 = pneg %p177
        %p531 = pneg %p174
        %p532 = pneg %p203
        %p533 = pneg %p200
        %p534 = pneg %p224
        %p535 = pneg %p221
        %p536 = pneg %p245
        %p537 = pneg %p242
        %p538 = pneg %p266
        %p539 = pneg %p263
        %p540 = pneg %p287
        %p541 = pneg %p284
        %p542 = pneg %p315
        %p543 = pneg %p312
        %s544 = sand.u32 %s302, 1
        %s545 = scalar_lea.sflag [#allocation5], %s544
        %s546 = sand.u32 %s302, 1
        %s547 = smul.addr %s546, 8
        %s548 = scalar_lea.vmem [#allocation18], %s547
        %p550 = scmp.eq.s32.totalorder %s39, 0
        // Predicated region
        $region101: #{tpu_custom_call.1} parent=63 // pred_check
          %p551 = pneg %p550
        $region102: #{tpu_custom_call.1} parent=63 // pred_check_branch
          %553 = sbr.rel (%p551) target = $region104
        $region103: #{tpu_custom_call.1} parent=63 // pred_region
          %v554 = vld [vmem:[%s470] sm:$0xff]
          %vm555 = vcmask 261120
          %v556 = vsel %vm555, %v554, 0.0
          %557 = vadd.xlane.f32.xlu0 %v556
          %v558 = vpop.xlane.xlu0 %557
          %v559 = vrcp.pop 32.0
          %v560 = vmul.f32 %v558, %v559
          %v561 = vsub.f32 %v554, %v560
          %v562 = vmul.f32 %v561, %v561
          %v563 = vsel %vm555, %v562, 0.0
          %564 = vadd.xlane.f32.xlu0 %v563
          %v565 = vpop.xlane.xlu0 %564
          %v566 = vmul.f32 %v565, %v559
          %v567 = vadd.f32 %v566, 1e-05
          %v568 = vrsqrt.pop %v567
          %v569 = vmul.f32 %v561, %v568
          %v570 = vld [vmem:[#allocation8] sm:$0x1]
          %v572 = vlaneseq
          %v573 = vshrl.u32 %v572, 7
          %v574 = vsub.s32 0, %v573
          %v575 = vrot.slane %v570, %v574
          %v577 = vmul.f32 %v569, %v575
          %v578 = vld [vmem:[#allocation9] sm:$0x1]
          %v580 = vlaneseq
          %v581 = vshrl.u32 %v580, 7
          %v582 = vsub.s32 0, %v581
          %v583 = vrot.slane %v578, %v582
          %v585 = vadd.f32 %v577, %v583
          %v586 = vpack.c.bf16 %v585, %v585
          %v587 = vld [vmem:[#allocation11] sm:$0xf]
          %v588 = vld [vmem:[#allocation11 + $0x4] sm:$0xf]
          %v589 = vld [vmem:[#allocation11 + $0x8] sm:$0xf]
          %v590 = vld [vmem:[#allocation11 + $0xc] sm:$0xf]
          %v591 = vld [vmem:[#allocation12] sm:$0x1]
          %v593 = vlaneseq
          %v594 = vshrl.u32 %v593, 7
          %v595 = vsub.s32 0, %v594
          %v596 = vrot.slane %v591, %v595
          %v602 = vunpack.c.l.b16 %v587
          %v603 = vunpack.c.l.b16 %v588
          %v604 = vunpack.c.l.b16 %v589
          %v605 = vunpack.c.l.b16 %v590
          %v606 = vpack.c.b16 %v603, %v602
          %v607 = vpack.c.b16 %v605, %v604
          %v611 = vsel %vm555, %v586, 0
          %613 = vmatprep.subr.bf16.mxu0 0
          %614 = vmatpush1.bf16.msra.mxu0 0
          %615 = vmatprep.subr.bf16.mxu0 0
          %616 = vmatpush1.bf16.msra.mxu0 0
          %617 = vmatprep.subr.bf16.mxu0 0
          %618 = vmatpush1.bf16.msra.mxu0 0
          %619 = vmatprep.subr.bf16.mxu0 0
          %620 = vmatpush1.bf16.msra.mxu0 0
          %621 = vmatprep.subr.bf16.mxu0 0
          %622 = vmatpush1.bf16.msra.mxu0 0
          %623 = vmatprep.subr.bf16.mxu0 0
          %624 = vmatpush1.bf16.msra.mxu0 0
          %625 = vmatprep.subr.bf16.mxu0 0
          %626 = vmatpush1.bf16.msra.mxu0 %v607
          %627 = vmatprep.subr.bf16.mxu0 0
          %628 = vmatpush1.bf16.msra.mxu0 %v606
          %629 = vmatprep.subr.bf16.mxu0 0
          %630 = vmatpush2.bf16.msra.mxu0 0
          %631 = vmatprep.subr.bf16.mxu0 0
          %632 = vmatpush2.bf16.msra.mxu0 0
          %633 = vmatprep.subr.bf16.mxu0 0
          %634 = vmatpush2.bf16.msra.mxu0 0
          %635 = vmatprep.subr.bf16.mxu0 0
          %636 = vmatpush2.bf16.msra.mxu0 0
          %637 = vmatprep.subr.bf16.mxu0 0
          %638 = vmatpush2.bf16.msra.mxu0 0
          %639 = vmatprep.subr.bf16.mxu0 0
          %640 = vmatpush2.bf16.msra.mxu0 0
          %641 = vmatprep.subr.bf16.mxu0 0
          %642 = vmatpush2.bf16.msra.mxu0 0
          %643 = vmatprep.subr.bf16.mxu0 0
          %644 = vmatpush2.bf16.msra.mxu0 0
          %645 = vmatprep.mubr.bf16.mxu0 0
          %646 = vmatmul.mubr.bf16.gmra.mxu0 %v611
          %v647 = vpop.f32.mrf.mxu0
          %v648 = vadd.f32 %v596, %v647
          %v649 = vpop.f32.mrf.mxu0
          %v650 = vpop.f32.mrf.mxu0
          %v651 = vpop.f32.mrf.mxu0
          %652 = vdwg.mxu0
          %vm653 = vcmask 785408
          %654 = vst.msk [vmem:[#allocation2] sm:$0xff] %vm653, %v648
        $region104: #{tpu_custom_call.1} parent=63 // pred_fallthru
          _
        %s655 = smul.u32 %s39, 8
        %s656 = scalar_lea.vmem [#allocation2], %s655
        %v657 = vld [vmem:[%s656] sm:$0xff]
        %v658 = vld [vmem:[%s478] sm:$0x1]
        %vm659 = vcmp.gt.f32.partialorder %v658, 0.5
        %v660 = vsel %vm659, 0.0, -1e+30
        %v661 = vlaneseq
        %v662 = vshrl.u32 %v661, 7
        %v663 = vsub.s32 7, %v662
        %v664 = vand.u32 %v663, 1
        %vm665 = vcmp.ne.s32.totalorder %v664, 0
        %v666 = vand.u32 %v663, 2
        %vm667 = vcmp.ne.s32.totalorder %v666, 0
        %v668 = vand.u32 %v663, 4
        %vm669 = vcmp.ne.s32.totalorder %v668, 0
        %v670 = vld [vmem:[#allocation15] sm:$0x1]
        %v671 = vlaneseq
        %v672 = vshrl.u32 %v671, 7
        %v673 = vsub.s32 0, %v672
        %v674 = vrot.slane %v670, %v673
        %v675 = vadd.f32 %v657, %v674
        %v676 = vpack.c.bf16 %v675, %v675
        %v677 = vld [vmem:[#allocation17] sm:$0x1]
        %v678 = vlaneseq
        %v679 = vshrl.u32 %v678, 7
        %v680 = vsub.s32 0, %v679
        %v681 = vrot.slane %v677, %v680
        %v682 = vadd.f32 %v657, %v681
        %v683 = vpack.c.bf16 %v682, %v682
        %v684 = vld [vmem:[#allocation2] sm:$0xff]
        %v685 = vpack.c.bf16 %v684, %v684
        %v686 = vld [vmem:[#allocation14] sm:$0xf]
        %vm687 = vcmask 64512
        %v689 = vsel %vm687, %v683, 0
        %vm691 = vcmask 1043456
        %v693 = vsel %vm691, %v686, 0
        %695 = vmatprep.subr.bf16.mxu0 0
        %696 = vmatpush1.bf16.msra.mxu0 0
        %697 = vmatprep.subr.bf16.mxu0 0
        %698 = vmatpush1.bf16.msra.mxu0 0
        %699 = vmatprep.subr.bf16.mxu0 0
        %700 = vmatpush1.bf16.msra.mxu0 0
        %701 = vmatprep.subr.bf16.mxu0 0
        %702 = vmatpush1.bf16.msra.mxu0 0
        %703 = vmatprep.subr.bf16.mxu0 0
        %704 = vmatpush1.bf16.msra.mxu0 0
        %705 = vmatprep.subr.bf16.mxu0 0
        %706 = vmatpush1.bf16.msra.mxu0 0
        %707 = vmatprep.subr.bf16.mxu0 0
        %708 = vmatpush1.bf16.msra.mxu0 0
        %709 = vmatprep.subr.bf16.mxu0 0
        %710 = vmatpush1.bf16.msra.mxu0 %v693
        %711 = vmatprep.subr.bf16.mxu0 0
        %712 = vmatpush2.bf16.msra.mxu0 0
        %713 = vmatprep.subr.bf16.mxu0 0
        %714 = vmatpush2.bf16.msra.mxu0 0
        %715 = vmatprep.subr.bf16.mxu0 0
        %716 = vmatpush2.bf16.msra.mxu0 0
        %717 = vmatprep.subr.bf16.mxu0 0
        %718 = vmatpush2.bf16.msra.mxu0 0
        %719 = vmatprep.subr.bf16.mxu0 0
        %720 = vmatpush2.bf16.msra.mxu0 0
        %721 = vmatprep.subr.bf16.mxu0 0
        %722 = vmatpush2.bf16.msra.mxu0 0
        %723 = vmatprep.subr.bf16.mxu0 0
        %724 = vmatpush2.bf16.msra.mxu0 0
        %725 = vmatprep.subr.bf16.mxu0 0
        %726 = vmatpush2.bf16.msra.mxu0 0
        %727 = vmatprep.mubr.bf16.mxu0 0
        %728 = vmatmul.mubr.bf16.gmra.mxu0 %v689
        %v729 = vpop.f32.mrf.mxu0
        %v730 = vadd.f32 0.0, %v729
        %v731 = vpop.f32.mrf.mxu0
        %v732 = vpop.f32.mrf.mxu0
        %v733 = vpop.f32.mrf.mxu0
        %734 = vdwg.mxu0
        %735 = vrot.lane.b32.xlu0 %v730, 127
        %v736 = vpop.permute.xlu0 %735
        %v737 = vsel %vm665, 1, 0
        %vm738 = vcmp.eq.s32.totalorder %v737, 1
        %v739 = vsel %vm738, %v736, %v730
        %740 = vrot.lane.b32.xlu0 %v739, 126
        %v741 = vpop.permute.xlu0 %740
        %v742 = vsel %vm667, 1, 0
        %vm743 = vcmp.eq.s32.totalorder %v742, 1
        %v744 = vsel %vm743, %v741, %v739
        %745 = vrot.lane.b32.xlu0 %v744, 124
        %v746 = vpop.permute.xlu0 %745
        %v747 = vsel %vm669, 1, 0
        %vm748 = vcmp.eq.s32.totalorder %v747, 1
        %v749 = vsel %vm748, %v746, %v744
        %751 = vrot.lane.b32.xlu0 %v685, 96
        %v752 = vpop.permute.xlu0 %751
        %v754 = vsel %vm687, %v676, 0
        %v757 = vsel %vm687, %v752, 0
        %759 = vmatprep.subr.bf16.mxu0 0
        %760 = vmatpush1.bf16.xpose.msra.mxu0 0
        %761 = vmatprep.subr.bf16.mxu0 0
        %762 = vmatpush1.bf16.xpose.msra.mxu0 0
        %763 = vmatprep.subr.bf16.mxu0 0
        %764 = vmatpush1.bf16.xpose.msra.mxu0 0
        %765 = vmatprep.subr.bf16.mxu0 0
        %766 = vmatpush1.bf16.xpose.msra.mxu0 0
        %767 = vmatprep.subr.bf16.mxu0 0
        %768 = vmatpush1.bf16.xpose.msra.mxu0 0
        %769 = vmatprep.subr.bf16.mxu0 0
        %770 = vmatpush1.bf16.xpose.msra.mxu0 0
        %771 = vmatprep.subr.bf16.mxu0 0
        %772 = vmatpush1.bf16.xpose.msra.mxu0 0
        %773 = vmatprep.subr.bf16.mxu0 0
        %774 = vmatpush1.bf16.xpose.msra.mxu0 %v757
        %775 = vmatprep.subr.bf16.mxu0 0
        %776 = vmatpush2.bf16.xpose.msra.mxu0 0
        %777 = vmatprep.subr.bf16.mxu0 0
        %778 = vmatpush2.bf16.xpose.msra.mxu0 0
        %779 = vmatprep.subr.bf16.mxu0 0
        %780 = vmatpush2.bf16.xpose.msra.mxu0 0
        %781 = vmatprep.subr.bf16.mxu0 0
        %782 = vmatpush2.bf16.xpose.msra.mxu0 0
        %783 = vmatprep.subr.bf16.mxu0 0
        %784 = vmatpush2.bf16.xpose.msra.mxu0 0
        %785 = vmatprep.subr.bf16.mxu0 0
        %786 = vmatpush2.bf16.xpose.msra.mxu0 0
        %787 = vmatprep.subr.bf16.mxu0 0
        %788 = vmatpush2.bf16.xpose.msra.mxu0 0
        %789 = vmatprep.subr.bf16.mxu0 0
        %790 = vmatpush2.bf16.xpose.msra.mxu0 0
        %791 = vmatprep.mubr.bf16.mxu0 0
        %792 = vmatmul.mubr.bf16.gmra.mxu0 %v754
        %v793 = vpop.f32.mrf.mxu0
        %v794 = vadd.f32 %v749, %v793
        %v795 = vpop.f32.mrf.mxu0
        %v796 = vpop.f32.mrf.mxu0
        %v797 = vpop.f32.mrf.mxu0
        %798 = vdwg.mxu0
        %v800 = vlaneseq
        %v801 = vshrl.u32 %v800, 7
        %v802 = vsub.s32 0, %v801
        %v803 = vrot.slane %v660, %v802
        %v805 = vadd.f32 %v794, %v803
        %v806 = vsel %vm687, %v805, -inf
        %807 = vmax.xlane.f32.xlu0 %v806
        %v808 = vpop.xlane.xlu0 %807
        %v809 = vsub.f32 %v805, %v808
        %v810 = vmul.f32 %v809, 1.442695
        %v811 = vpow.pop %v810
        %v812 = vsel %vm687, %v811, 0.0
        %813 = vadd.xlane.f32.xlu0 %v812
        %v814 = vpop.xlane.xlu0 %813
        %v815 = vpack.c.bf16 %v811, %v811
        %816 = vrot.lane.b32.xlu0 %v685, 64
        %v817 = vpop.permute.xlu0 %816
        %v819 = vsel %vm687, %v815, 0
        %v822 = vsel %vm691, %v817, 0
        %824 = vmatprep.subr.bf16.mxu0 0
        %825 = vmatpush1.bf16.msra.mxu0 0
        %826 = vmatprep.subr.bf16.mxu0 0
        %827 = vmatpush1.bf16.msra.mxu0 0
        %828 = vmatprep.subr.bf16.mxu0 0
        %829 = vmatpush1.bf16.msra.mxu0 0
        %830 = vmatprep.subr.bf16.mxu0 0
        %831 = vmatpush1.bf16.msra.mxu0 0
        %832 = vmatprep.subr.bf16.mxu0 0
        %833 = vmatpush1.bf16.msra.mxu0 0
        %834 = vmatprep.subr.bf16.mxu0 0
        %835 = vmatpush1.bf16.msra.mxu0 0
        %836 = vmatprep.subr.bf16.mxu0 0
        %837 = vmatpush1.bf16.msra.mxu0 0
        %838 = vmatprep.subr.bf16.mxu0 0
        %839 = vmatpush1.bf16.msra.mxu0 %v822
        %840 = vmatprep.subr.bf16.mxu0 0
        %841 = vmatpush2.bf16.msra.mxu0 0
        %842 = vmatprep.subr.bf16.mxu0 0
        %843 = vmatpush2.bf16.msra.mxu0 0
        %844 = vmatprep.subr.bf16.mxu0 0
        %845 = vmatpush2.bf16.msra.mxu0 0
        %846 = vmatprep.subr.bf16.mxu0 0
        %847 = vmatpush2.bf16.msra.mxu0 0
        %848 = vmatprep.subr.bf16.mxu0 0
        %849 = vmatpush2.bf16.msra.mxu0 0
        %850 = vmatprep.subr.bf16.mxu0 0
        %851 = vmatpush2.bf16.msra.mxu0 0
        %852 = vmatprep.subr.bf16.mxu0 0
        %853 = vmatpush2.bf16.msra.mxu0 0
        %854 = vmatprep.subr.bf16.mxu0 0
        %855 = vmatpush2.bf16.msra.mxu0 0
        %856 = vmatprep.mubr.bf16.mxu0 0
        %857 = vmatmul.mubr.bf16.gmra.mxu0 %v819
        %v858 = vpop.f32.mrf.mxu0
        %v859 = vadd.f32 0.0, %v858
        %v860 = vpop.f32.mrf.mxu0
        %v861 = vpop.f32.mrf.mxu0
        %v862 = vpop.f32.mrf.mxu0
        %863 = vdwg.mxu0
        %v864 = vrcp.pop %v814
        %v865 = vmul.f32 %v859, %v864
        %v866 = vld [vmem:[#allocation15 + $0x1] sm:$0x1]
        %v867 = vlaneseq
        %v868 = vshrl.u32 %v867, 7
        %v869 = vsub.s32 0, %v868
        %v870 = vrot.slane %v866, %v869
        %872 = vrot.lane.b32.xlu0 %v870, 8
        %v873 = vpop.permute.xlu0 %872
        %v875 = vadd.f32 %v657, %v873
        %v876 = vpack.c.bf16 %v875, %v875
        %v877 = vld [vmem:[#allocation17 + $0x1] sm:$0x1]
        %v878 = vlaneseq
        %v879 = vshrl.u32 %v878, 7
        %v880 = vsub.s32 0, %v879
        %v881 = vrot.slane %v877, %v880
        %883 = vrot.lane.b32.xlu0 %v881, 8
        %v884 = vpop.permute.xlu0 %883
        %v886 = vadd.f32 %v657, %v884
        %v887 = vpack.c.bf16 %v886, %v886
        %v888 = vld [vmem:[#allocation14 + $0x4] sm:$0xf]
        %890 = vrot.lane.b32.xlu0 %v887, 120
        %v891 = vpop.permute.xlu0 %890
        %v893 = vsel %vm687, %v891, 0
        %v896 = vsel %vm691, %v888, 0
        %898 = vmatprep.subr.bf16.mxu0 0
        %899 = vmatpush1.bf16.msra.mxu0 0
        %900 = vmatprep.subr.bf16.mxu0 0
        %901 = vmatpush1.bf16.msra.mxu0 0
        %902 = vmatprep.subr.bf16.mxu0 0
        %903 = vmatpush1.bf16.msra.mxu0 0
        %904 = vmatprep.subr.bf16.mxu0 0
        %905 = vmatpush1.bf16.msra.mxu0 0
        %906 = vmatprep.subr.bf16.mxu0 0
        %907 = vmatpush1.bf16.msra.mxu0 0
        %908 = vmatprep.subr.bf16.mxu0 0
        %909 = vmatpush1.bf16.msra.mxu0 0
        %910 = vmatprep.subr.bf16.mxu0 0
        %911 = vmatpush1.bf16.msra.mxu0 0
        %912 = vmatprep.subr.bf16.mxu0 0
        %913 = vmatpush1.bf16.msra.mxu0 %v896
        %914 = vmatprep.subr.bf16.mxu0 0
        %915 = vmatpush2.bf16.msra.mxu0 0
        %916 = vmatprep.subr.bf16.mxu0 0
        %917 = vmatpush2.bf16.msra.mxu0 0
        %918 = vmatprep.subr.bf16.mxu0 0
        %919 = vmatpush2.bf16.msra.mxu0 0
        %920 = vmatprep.subr.bf16.mxu0 0
        %921 = vmatpush2.bf16.msra.mxu0 0
        %922 = vmatprep.subr.bf16.mxu0 0
        %923 = vmatpush2.bf16.msra.mxu0 0
        %924 = vmatprep.subr.bf16.mxu0 0
        %925 = vmatpush2.bf16.msra.mxu0 0
        %926 = vmatprep.subr.bf16.mxu0 0
        %927 = vmatpush2.bf16.msra.mxu0 0
        %928 = vmatprep.subr.bf16.mxu0 0
        %929 = vmatpush2.bf16.msra.mxu0 0
        %930 = vmatprep.mubr.bf16.mxu0 0
        %931 = vmatmul.mubr.bf16.gmra.mxu0 %v893
        %v932 = vpop.f32.mrf.mxu0
        %v933 = vadd.f32 0.0, %v932
        %v934 = vpop.f32.mrf.mxu0
        %v935 = vpop.f32.mrf.mxu0
        %v936 = vpop.f32.mrf.mxu0
        %937 = vdwg.mxu0
        %938 = vrot.lane.b32.xlu0 %v933, 127
        %v939 = vpop.permute.xlu0 %938
        %v940 = vsel %vm738, %v939, %v933
        %941 = vrot.lane.b32.xlu0 %v940, 126
        %v942 = vpop.permute.xlu0 %941
        %v943 = vsel %vm743, %v942, %v940
        %944 = vrot.lane.b32.xlu0 %v943, 124
        %v945 = vpop.permute.xlu0 %944
        %v946 = vsel %vm748, %v945, %v943
        %948 = vrot.lane.b32.xlu0 %v876, 120
        %v949 = vpop.permute.xlu0 %948
        %950 = vrot.lane.b32.xlu0 %v685, 88
        %v951 = vpop.permute.xlu0 %950
        %v953 = vsel %vm687, %v949, 0
        %v956 = vsel %vm687, %v951, 0
        %958 = vmatprep.subr.bf16.mxu0 0
        %959 = vmatpush1.bf16.xpose.msra.mxu0 0
        %960 = vmatprep.subr.bf16.mxu0 0
        %961 = vmatpush1.bf16.xpose.msra.mxu0 0
        %962 = vmatprep.subr.bf16.mxu0 0
        %963 = vmatpush1.bf16.xpose.msra.mxu0 0
        %964 = vmatprep.subr.bf16.mxu0 0
        %965 = vmatpush1.bf16.xpose.msra.mxu0 0
        %966 = vmatprep.subr.bf16.mxu0 0
        %967 = vmatpush1.bf16.xpose.msra.mxu0 0
        %968 = vmatprep.subr.bf16.mxu0 0
        %969 = vmatpush1.bf16.xpose.msra.mxu0 0
        %970 = vmatprep.subr.bf16.mxu0 0
        %971 = vmatpush1.bf16.xpose.msra.mxu0 0
        %972 = vmatprep.subr.bf16.mxu0 0
        %973 = vmatpush1.bf16.xpose.msra.mxu0 %v956
        %974 = vmatprep.subr.bf16.mxu0 0
        %975 = vmatpush2.bf16.xpose.msra.mxu0 0
        %976 = vmatprep.subr.bf16.mxu0 0
        %977 = vmatpush2.bf16.xpose.msra.mxu0 0
        %978 = vmatprep.subr.bf16.mxu0 0
        %979 = vmatpush2.bf16.xpose.msra.mxu0 0
        %980 = vmatprep.subr.bf16.mxu0 0
        %981 = vmatpush2.bf16.xpose.msra.mxu0 0
        %982 = vmatprep.subr.bf16.mxu0 0
        %983 = vmatpush2.bf16.xpose.msra.mxu0 0
        %984 = vmatprep.subr.bf16.mxu0 0
        %985 = vmatpush2.bf16.xpose.msra.mxu0 0
        %986 = vmatprep.subr.bf16.mxu0 0
        %987 = vmatpush2.bf16.xpose.msra.mxu0 0
        %988 = vmatprep.subr.bf16.mxu0 0
        %989 = vmatpush2.bf16.xpose.msra.mxu0 0
        %990 = vmatprep.mubr.bf16.mxu0 0
        %991 = vmatmul.mubr.bf16.gmra.mxu0 %v953
        %v992 = vpop.f32.mrf.mxu0
        %v993 = vadd.f32 %v946, %v992
        %v994 = vpop.f32.mrf.mxu0
        %v995 = vpop.f32.mrf.mxu0
        %v996 = vpop.f32.mrf.mxu0
        %997 = vdwg.mxu0
        %v998 = vadd.f32 %v993, %v803
        %v999 = vsel %vm687, %v998, -inf
        %1000 = vmax.xlane.f32.xlu0 %v999
        %v1001 = vpop.xlane.xlu0 %1000
        %v1002 = vsub.f32 %v998, %v1001
        %v1003 = vmul.f32 %v1002, 1.442695
        %v1004 = vpow.pop %v1003
        %v1005 = vsel %vm687, %v1004, 0.0
        %1006 = vadd.xlane.f32.xlu0 %v1005
        %v1007 = vpop.xlane.xlu0 %1006
        %v1008 = vpack.c.bf16 %v1004, %v1004
        %1009 = vrot.lane.b32.xlu0 %v685, 56
        %v1010 = vpop.permute.xlu0 %1009
        %v1012 = vsel %vm687, %v1008, 0
        %v1015 = vsel %vm691, %v1010, 0
        %1017 = vmatprep.subr.bf16.mxu0 0
        %1018 = vmatpush1.bf16.msra.mxu0 0
        %1019 = vmatprep.subr.bf16.mxu0 0
        %1020 = vmatpush1.bf16.msra.mxu0 0
        %1021 = vmatprep.subr.bf16.mxu0 0
        %1022 = vmatpush1.bf16.msra.mxu0 0
        %1023 = vmatprep.subr.bf16.mxu0 0
        %1024 = vmatpush1.bf16.msra.mxu0 0
        %1025 = vmatprep.subr.bf16.mxu0 0
        %1026 = vmatpush1.bf16.msra.mxu0 0
        %1027 = vmatprep.subr.bf16.mxu0 0
        %1028 = vmatpush1.bf16.msra.mxu0 0
        %1029 = vmatprep.subr.bf16.mxu0 0
        %1030 = vmatpush1.bf16.msra.mxu0 0
        %1031 = vmatprep.subr.bf16.mxu0 0
        %1032 = vmatpush1.bf16.msra.mxu0 %v1015
        %1033 = vmatprep.subr.bf16.mxu0 0
        %1034 = vmatpush2.bf16.msra.mxu0 0
        %1035 = vmatprep.subr.bf16.mxu0 0
        %1036 = vmatpush2.bf16.msra.mxu0 0
        %1037 = vmatprep.subr.bf16.mxu0 0
        %1038 = vmatpush2.bf16.msra.mxu0 0
        %1039 = vmatprep.subr.bf16.mxu0 0
        %1040 = vmatpush2.bf16.msra.mxu0 0
        %1041 = vmatprep.subr.bf16.mxu0 0
        %1042 = vmatpush2.bf16.msra.mxu0 0
        %1043 = vmatprep.subr.bf16.mxu0 0
        %1044 = vmatpush2.bf16.msra.mxu0 0
        %1045 = vmatprep.subr.bf16.mxu0 0
        %1046 = vmatpush2.bf16.msra.mxu0 0
        %1047 = vmatprep.subr.bf16.mxu0 0
        %1048 = vmatpush2.bf16.msra.mxu0 0
        %1049 = vmatprep.mubr.bf16.mxu0 0
        %1050 = vmatmul.mubr.bf16.gmra.mxu0 %v1012
        %v1051 = vpop.f32.mrf.mxu0
        %v1052 = vadd.f32 0.0, %v1051
        %v1053 = vpop.f32.mrf.mxu0
        %v1054 = vpop.f32.mrf.mxu0
        %v1055 = vpop.f32.mrf.mxu0
        %1056 = vdwg.mxu0
        %v1057 = vrcp.pop %v1007
        %v1058 = vmul.f32 %v1052, %v1057
        %v1059 = vld [vmem:[#allocation15 + $0x2] sm:$0x1]
        %v1060 = vlaneseq
        %v1061 = vshrl.u32 %v1060, 7
        %v1062 = vsub.s32 0, %v1061
        %v1063 = vrot.slane %v1059, %v1062
        %1065 = vrot.lane.b32.xlu0 %v1063, 16
        %v1066 = vpop.permute.xlu0 %1065
        %v1068 = vadd.f32 %v657, %v1066
        %v1069 = vpack.c.bf16 %v1068, %v1068
        %v1070 = vld [vmem:[#allocation17 + $0x2] sm:$0x1]
        %v1071 = vlaneseq
        %v1072 = vshrl.u32 %v1071, 7
        %v1073 = vsub.s32 0, %v1072
        %v1074 = vrot.slane %v1070, %v1073
        %1076 = vrot.lane.b32.xlu0 %v1074, 16
        %v1077 = vpop.permute.xlu0 %1076
        %v1079 = vadd.f32 %v657, %v1077
        %v1080 = vpack.c.bf16 %v1079, %v1079
        %v1081 = vld [vmem:[#allocation14 + $0x8] sm:$0xf]
        %1083 = vrot.lane.b32.xlu0 %v1080, 112
        %v1084 = vpop.permute.xlu0 %1083
        %v1086 = vsel %vm687, %v1084, 0
        %v1089 = vsel %vm691, %v1081, 0
        %1091 = vmatprep.subr.bf16.mxu0 0
        %1092 = vmatpush1.bf16.msra.mxu0 0
        %1093 = vmatprep.subr.bf16.mxu0 0
        %1094 = vmatpush1.bf16.msra.mxu0 0
        %1095 = vmatprep.subr.bf16.mxu0 0
        %1096 = vmatpush1.bf16.msra.mxu0 0
        %1097 = vmatprep.subr.bf16.mxu0 0
        %1098 = vmatpush1.bf16.msra.mxu0 0
        %1099 = vmatprep.subr.bf16.mxu0 0
        %1100 = vmatpush1.bf16.msra.mxu0 0
        %1101 = vmatprep.subr.bf16.mxu0 0
        %1102 = vmatpush1.bf16.msra.mxu0 0
        %1103 = vmatprep.subr.bf16.mxu0 0
        %1104 = vmatpush1.bf16.msra.mxu0 0
        %1105 = vmatprep.subr.bf16.mxu0 0
        %1106 = vmatpush1.bf16.msra.mxu0 %v1089
        %1107 = vmatprep.subr.bf16.mxu0 0
        %1108 = vmatpush2.bf16.msra.mxu0 0
        %1109 = vmatprep.subr.bf16.mxu0 0
        %1110 = vmatpush2.bf16.msra.mxu0 0
        %1111 = vmatprep.subr.bf16.mxu0 0
        %1112 = vmatpush2.bf16.msra.mxu0 0
        %1113 = vmatprep.subr.bf16.mxu0 0
        %1114 = vmatpush2.bf16.msra.mxu0 0
        %1115 = vmatprep.subr.bf16.mxu0 0
        %1116 = vmatpush2.bf16.msra.mxu0 0
        %1117 = vmatprep.subr.bf16.mxu0 0
        %1118 = vmatpush2.bf16.msra.mxu0 0
        %1119 = vmatprep.subr.bf16.mxu0 0
        %1120 = vmatpush2.bf16.msra.mxu0 0
        %1121 = vmatprep.subr.bf16.mxu0 0
        %1122 = vmatpush2.bf16.msra.mxu0 0
        %1123 = vmatprep.mubr.bf16.mxu0 0
        %1124 = vmatmul.mubr.bf16.gmra.mxu0 %v1086
        %v1125 = vpop.f32.mrf.mxu0
        %v1126 = vadd.f32 0.0, %v1125
        %v1127 = vpop.f32.mrf.mxu0
        %v1128 = vpop.f32.mrf.mxu0
        %v1129 = vpop.f32.mrf.mxu0
        %1130 = vdwg.mxu0
        %1131 = vrot.lane.b32.xlu0 %v1126, 127
        %v1132 = vpop.permute.xlu0 %1131
        %v1133 = vsel %vm738, %v1132, %v1126
        %1134 = vrot.lane.b32.xlu0 %v1133, 126
        %v1135 = vpop.permute.xlu0 %1134
        %v1136 = vsel %vm743, %v1135, %v1133
        %1137 = vrot.lane.b32.xlu0 %v1136, 124
        %v1138 = vpop.permute.xlu0 %1137
        %v1139 = vsel %vm748, %v1138, %v1136
        %1141 = vrot.lane.b32.xlu0 %v1069, 112
        %v1142 = vpop.permute.xlu0 %1141
        %1143 = vrot.lane.b32.xlu0 %v685, 80
        %v1144 = vpop.permute.xlu0 %1143
        %v1146 = vsel %vm687, %v1142, 0
        %v1149 = vsel %vm687, %v1144, 0
        %1151 = vmatprep.subr.bf16.mxu0 0
        %1152 = vmatpush1.bf16.xpose.msra.mxu0 0
        %1153 = vmatprep.subr.bf16.mxu0 0
        %1154 = vmatpush1.bf16.xpose.msra.mxu0 0
        %1155 = vmatprep.subr.bf16.mxu0 0
        %1156 = vmatpush1.bf16.xpose.msra.mxu0 0
        %1157 = vmatprep.subr.bf16.mxu0 0
        %1158 = vmatpush1.bf16.xpose.msra.mxu0 0
        %1159 = vmatprep.subr.bf16.mxu0 0
        %1160 = vmatpush1.bf16.xpose.msra.mxu0 0
        %1161 = vmatprep.subr.bf16.mxu0 0
        %1162 = vmatpush1.bf16.xpose.msra.mxu0 0
        %1163 = vmatprep.subr.bf16.mxu0 0
        %1164 = vmatpush1.bf16.xpose.msra.mxu0 0
        %1165 = vmatprep.subr.bf16.mxu0 0
        %1166 = vmatpush1.bf16.xpose.msra.mxu0 %v1149
        %1167 = vmatprep.subr.bf16.mxu0 0
        %1168 = vmatpush2.bf16.xpose.msra.mxu0 0
        %1169 = vmatprep.subr.bf16.mxu0 0
        %1170 = vmatpush2.bf16.xpose.msra.mxu0 0
        %1171 = vmatprep.subr.bf16.mxu0 0
        %1172 = vmatpush2.bf16.xpose.msra.mxu0 0
        %1173 = vmatprep.subr.bf16.mxu0 0
        %1174 = vmatpush2.bf16.xpose.msra.mxu0 0
        %1175 = vmatprep.subr.bf16.mxu0 0
        %1176 = vmatpush2.bf16.xpose.msra.mxu0 0
        %1177 = vmatprep.subr.bf16.mxu0 0
        %1178 = vmatpush2.bf16.xpose.msra.mxu0 0
        %1179 = vmatprep.subr.bf16.mxu0 0
        %1180 = vmatpush2.bf16.xpose.msra.mxu0 0
        %1181 = vmatprep.subr.bf16.mxu0 0
        %1182 = vmatpush2.bf16.xpose.msra.mxu0 0
        %1183 = vmatprep.mubr.bf16.mxu0 0
        %1184 = vmatmul.mubr.bf16.gmra.mxu0 %v1146
        %v1185 = vpop.f32.mrf.mxu0
        %v1186 = vadd.f32 %v1139, %v1185
        %v1187 = vpop.f32.mrf.mxu0
        %v1188 = vpop.f32.mrf.mxu0
        %v1189 = vpop.f32.mrf.mxu0
        %1190 = vdwg.mxu0
        %v1191 = vadd.f32 %v1186, %v803
        %v1192 = vsel %vm687, %v1191, -inf
        %1193 = vmax.xlane.f32.xlu0 %v1192
        %v1194 = vpop.xlane.xlu0 %1193
        %v1195 = vsub.f32 %v1191, %v1194
        %v1196 = vmul.f32 %v1195, 1.442695
        %v1197 = vpow.pop %v1196
        %v1198 = vsel %vm687, %v1197, 0.0
        %1199 = vadd.xlane.f32.xlu0 %v1198
        %v1200 = vpop.xlane.xlu0 %1199
        %v1201 = vpack.c.bf16 %v1197, %v1197
        %1202 = vrot.lane.b32.xlu0 %v685, 48
        %v1203 = vpop.permute.xlu0 %1202
        %v1205 = vsel %vm687, %v1201, 0
        %v1208 = vsel %vm691, %v1203, 0
        %1210 = vmatprep.subr.bf16.mxu0 0
        %1211 = vmatpush1.bf16.msra.mxu0 0
        %1212 = vmatprep.subr.bf16.mxu0 0
        %1213 = vmatpush1.bf16.msra.mxu0 0
        %1214 = vmatprep.subr.bf16.mxu0 0
        %1215 = vmatpush1.bf16.msra.mxu0 0
        %1216 = vmatprep.subr.bf16.mxu0 0
        %1217 = vmatpush1.bf16.msra.mxu0 0
        %1218 = vmatprep.subr.bf16.mxu0 0
        %1219 = vmatpush1.bf16.msra.mxu0 0
        %1220 = vmatprep.subr.bf16.mxu0 0
        %1221 = vmatpush1.bf16.msra.mxu0 0
        %1222 = vmatprep.subr.bf16.mxu0 0
        %1223 = vmatpush1.bf16.msra.mxu0 0
        %1224 = vmatprep.subr.bf16.mxu0 0
        %1225 = vmatpush1.bf16.msra.mxu0 %v1208
        %1226 = vmatprep.subr.bf16.mxu0 0
        %1227 = vmatpush2.bf16.msra.mxu0 0
        %1228 = vmatprep.subr.bf16.mxu0 0
        %1229 = vmatpush2.bf16.msra.mxu0 0
        %1230 = vmatprep.subr.bf16.mxu0 0
        %1231 = vmatpush2.bf16.msra.mxu0 0
        %1232 = vmatprep.subr.bf16.mxu0 0
        %1233 = vmatpush2.bf16.msra.mxu0 0
        %1234 = vmatprep.subr.bf16.mxu0 0
        %1235 = vmatpush2.bf16.msra.mxu0 0
        %1236 = vmatprep.subr.bf16.mxu0 0
        %1237 = vmatpush2.bf16.msra.mxu0 0
        %1238 = vmatprep.subr.bf16.mxu0 0
        %1239 = vmatpush2.bf16.msra.mxu0 0
        %1240 = vmatprep.subr.bf16.mxu0 0
        %1241 = vmatpush2.bf16.msra.mxu0 0
        %1242 = vmatprep.mubr.bf16.mxu0 0
        %1243 = vmatmul.mubr.bf16.gmra.mxu0 %v1205
        %v1244 = vpop.f32.mrf.mxu0
        %v1245 = vadd.f32 0.0, %v1244
        %v1246 = vpop.f32.mrf.mxu0
        %v1247 = vpop.f32.mrf.mxu0
        %v1248 = vpop.f32.mrf.mxu0
        %1249 = vdwg.mxu0
        %v1250 = vrcp.pop %v1200
        %v1251 = vmul.f32 %v1245, %v1250
        %v1252 = vld [vmem:[#allocation15 + $0x3] sm:$0x1]
        %v1253 = vlaneseq
        %v1254 = vshrl.u32 %v1253, 7
        %v1255 = vsub.s32 0, %v1254
        %v1256 = vrot.slane %v1252, %v1255
        %1258 = vrot.lane.b32.xlu0 %v1256, 24
        %v1259 = vpop.permute.xlu0 %1258
        %v1261 = vadd.f32 %v657, %v1259
        %v1262 = vpack.c.bf16 %v1261, %v1261
        %v1263 = vld [vmem:[#allocation17 + $0x3] sm:$0x1]
        %v1264 = vlaneseq
        %v1265 = vshrl.u32 %v1264, 7
        %v1266 = vsub.s32 0, %v1265
        %v1267 = vrot.slane %v1263, %v1266
        %1269 = vrot.lane.b32.xlu0 %v1267, 24
        %v1270 = vpop.permute.xlu0 %1269
        %v1272 = vadd.f32 %v657, %v1270
        %v1273 = vpack.c.bf16 %v1272, %v1272
        %v1274 = vld [vmem:[#allocation14 + $0xc] sm:$0xf]
        %1276 = vrot.lane.b32.xlu0 %v1273, 104
        %v1277 = vpop.permute.xlu0 %1276
        %v1279 = vsel %vm687, %v1277, 0
        %v1282 = vsel %vm691, %v1274, 0
        %1284 = vmatprep.subr.bf16.mxu0 0
        %1285 = vmatpush1.bf16.msra.mxu0 0
        %1286 = vmatprep.subr.bf16.mxu0 0
        %1287 = vmatpush1.bf16.msra.mxu0 0
        %1288 = vmatprep.subr.bf16.mxu0 0
        %1289 = vmatpush1.bf16.msra.mxu0 0
        %1290 = vmatprep.subr.bf16.mxu0 0
        %1291 = vmatpush1.bf16.msra.mxu0 0
        %1292 = vmatprep.subr.bf16.mxu0 0
        %1293 = vmatpush1.bf16.msra.mxu0 0
        %1294 = vmatprep.subr.bf16.mxu0 0
        %1295 = vmatpush1.bf16.msra.mxu0 0
        %1296 = vmatprep.subr.bf16.mxu0 0
        %1297 = vmatpush1.bf16.msra.mxu0 0
        %1298 = vmatprep.subr.bf16.mxu0 0
        %1299 = vmatpush1.bf16.msra.mxu0 %v1282
        %1300 = vmatprep.subr.bf16.mxu0 0
        %1301 = vmatpush2.bf16.msra.mxu0 0
        %1302 = vmatprep.subr.bf16.mxu0 0
        %1303 = vmatpush2.bf16.msra.mxu0 0
        %1304 = vmatprep.subr.bf16.mxu0 0
        %1305 = vmatpush2.bf16.msra.mxu0 0
        %1306 = vmatprep.subr.bf16.mxu0 0
        %1307 = vmatpush2.bf16.msra.mxu0 0
        %1308 = vmatprep.subr.bf16.mxu0 0
        %1309 = vmatpush2.bf16.msra.mxu0 0
        %1310 = vmatprep.subr.bf16.mxu0 0
        %1311 = vmatpush2.bf16.msra.mxu0 0
        %1312 = vmatprep.subr.bf16.mxu0 0
        %1313 = vmatpush2.bf16.msra.mxu0 0
        %1314 = vmatprep.subr.bf16.mxu0 0
        %1315 = vmatpush2.bf16.msra.mxu0 0
        %1316 = vmatprep.mubr.bf16.mxu0 0
        %1317 = vmatmul.mubr.bf16.gmra.mxu0 %v1279
        %v1318 = vpop.f32.mrf.mxu0
        %v1319 = vadd.f32 0.0, %v1318
        %v1320 = vpop.f32.mrf.mxu0
        %v1321 = vpop.f32.mrf.mxu0
        %v1322 = vpop.f32.mrf.mxu0
        %1323 = vdwg.mxu0
        %1324 = vrot.lane.b32.xlu0 %v1319, 127
        %v1325 = vpop.permute.xlu0 %1324
        %v1326 = vsel %vm738, %v1325, %v1319
        %1327 = vrot.lane.b32.xlu0 %v1326, 126
        %v1328 = vpop.permute.xlu0 %1327
        %v1329 = vsel %vm743, %v1328, %v1326
        %1330 = vrot.lane.b32.xlu0 %v1329, 124
        %v1331 = vpop.permute.xlu0 %1330
        %v1332 = vsel %vm748, %v1331, %v1329
        %1334 = vrot.lane.b32.xlu0 %v1262, 104
        %v1335 = vpop.permute.xlu0 %1334
        %1336 = vrot.lane.b32.xlu0 %v685, 72
        %v1337 = vpop.permute.xlu0 %1336
        %v1339 = vsel %vm687, %v1335, 0
        %v1342 = vsel %vm687, %v1337, 0
        %1344 = vmatprep.subr.bf16.mxu0 0
        %1345 = vmatpush1.bf16.xpose.msra.mxu0 0
        %1346 = vmatprep.subr.bf16.mxu0 0
        %1347 = vmatpush1.bf16.xpose.msra.mxu0 0
        %1348 = vmatprep.subr.bf16.mxu0 0
        %1349 = vmatpush1.bf16.xpose.msra.mxu0 0
        %1350 = vmatprep.subr.bf16.mxu0 0
        %1351 = vmatpush1.bf16.xpose.msra.mxu0 0
        %1352 = vmatprep.subr.bf16.mxu0 0
        %1353 = vmatpush1.bf16.xpose.msra.mxu0 0
        %1354 = vmatprep.subr.bf16.mxu0 0
        %1355 = vmatpush1.bf16.xpose.msra.mxu0 0
        %1356 = vmatprep.subr.bf16.mxu0 0
        %1357 = vmatpush1.bf16.xpose.msra.mxu0 0
        %1358 = vmatprep.subr.bf16.mxu0 0
        %1359 = vmatpush1.bf16.xpose.msra.mxu0 %v1342
        %1360 = vmatprep.subr.bf16.mxu0 0
        %1361 = vmatpush2.bf16.xpose.msra.mxu0 0
        %1362 = vmatprep.subr.bf16.mxu0 0
        %1363 = vmatpush2.bf16.xpose.msra.mxu0 0
        %1364 = vmatprep.subr.bf16.mxu0 0
        %1365 = vmatpush2.bf16.xpose.msra.mxu0 0
        %1366 = vmatprep.subr.bf16.mxu0 0
        %1367 = vmatpush2.bf16.xpose.msra.mxu0 0
        %1368 = vmatprep.subr.bf16.mxu0 0
        %1369 = vmatpush2.bf16.xpose.msra.mxu0 0
        %1370 = vmatprep.subr.bf16.mxu0 0
        %1371 = vmatpush2.bf16.xpose.msra.mxu0 0
        %1372 = vmatprep.subr.bf16.mxu0 0
        %1373 = vmatpush2.bf16.xpose.msra.mxu0 0
        %1374 = vmatprep.subr.bf16.mxu0 0
        %1375 = vmatpush2.bf16.xpose.msra.mxu0 0
        %1376 = vmatprep.mubr.bf16.mxu0 0
        %1377 = vmatmul.mubr.bf16.gmra.mxu0 %v1339
        %v1378 = vpop.f32.mrf.mxu0
        %v1379 = vadd.f32 %v1332, %v1378
        %v1380 = vpop.f32.mrf.mxu0
        %v1381 = vpop.f32.mrf.mxu0
        %v1382 = vpop.f32.mrf.mxu0
        %1383 = vdwg.mxu0
        %v1384 = vadd.f32 %v1379, %v803
        %v1385 = vsel %vm687, %v1384, -inf
        %1386 = vmax.xlane.f32.xlu0 %v1385
        %v1387 = vpop.xlane.xlu0 %1386
        %v1388 = vsub.f32 %v1384, %v1387
        %v1389 = vmul.f32 %v1388, 1.442695
        %v1390 = vpow.pop %v1389
        %v1391 = vsel %vm687, %v1390, 0.0
        %1392 = vadd.xlane.f32.xlu0 %v1391
        %v1393 = vpop.xlane.xlu0 %1392
        %v1394 = vpack.c.bf16 %v1390, %v1390
        %1395 = vrot.lane.b32.xlu0 %v685, 40
        %v1396 = vpop.permute.xlu0 %1395
        %v1398 = vsel %vm687, %v1394, 0
        %v1401 = vsel %vm691, %v1396, 0
        %1403 = vmatprep.subr.bf16.mxu0 0
        %1404 = vmatpush1.bf16.msra.mxu0 0
        %1405 = vmatprep.subr.bf16.mxu0 0
        %1406 = vmatpush1.bf16.msra.mxu0 0
        %1407 = vmatprep.subr.bf16.mxu0 0
        %1408 = vmatpush1.bf16.msra.mxu0 0
        %1409 = vmatprep.subr.bf16.mxu0 0
        %1410 = vmatpush1.bf16.msra.mxu0 0
        %1411 = vmatprep.subr.bf16.mxu0 0
        %1412 = vmatpush1.bf16.msra.mxu0 0
        %1413 = vmatprep.subr.bf16.mxu0 0
        %1414 = vmatpush1.bf16.msra.mxu0 0
        %1415 = vmatprep.subr.bf16.mxu0 0
        %1416 = vmatpush1.bf16.msra.mxu0 0
        %1417 = vmatprep.subr.bf16.mxu0 0
        %1418 = vmatpush1.bf16.msra.mxu0 %v1401
        %1419 = vmatprep.subr.bf16.mxu0 0
        %1420 = vmatpush2.bf16.msra.mxu0 0
        %1421 = vmatprep.subr.bf16.mxu0 0
        %1422 = vmatpush2.bf16.msra.mxu0 0
        %1423 = vmatprep.subr.bf16.mxu0 0
        %1424 = vmatpush2.bf16.msra.mxu0 0
        %1425 = vmatprep.subr.bf16.mxu0 0
        %1426 = vmatpush2.bf16.msra.mxu0 0
        %1427 = vmatprep.subr.bf16.mxu0 0
        %1428 = vmatpush2.bf16.msra.mxu0 0
        %1429 = vmatprep.subr.bf16.mxu0 0
        %1430 = vmatpush2.bf16.msra.mxu0 0
        %1431 = vmatprep.subr.bf16.mxu0 0
        %1432 = vmatpush2.bf16.msra.mxu0 0
        %1433 = vmatprep.subr.bf16.mxu0 0
        %1434 = vmatpush2.bf16.msra.mxu0 0
        %1435 = vmatprep.mubr.bf16.mxu0 0
        %1436 = vmatmul.mubr.bf16.gmra.mxu0 %v1398
        %v1437 = vpop.f32.mrf.mxu0
        %v1438 = vadd.f32 0.0, %v1437
        %v1439 = vpop.f32.mrf.mxu0
        %v1440 = vpop.f32.mrf.mxu0
        %v1441 = vpop.f32.mrf.mxu0
        %1442 = vdwg.mxu0
        %v1443 = vrcp.pop %v1393
        %v1444 = vmul.f32 %v1438, %v1443
        %1446 = vrot.lane.b32.xlu0 %v1058, 8
        %v1447 = vpop.permute.xlu0 %1446
        %1450 = vrot.lane.b32.xlu0 %v1251, 16
        %v1451 = vpop.permute.xlu0 %1450
        %1454 = vrot.lane.b32.xlu0 %v1444, 24
        %v1455 = vpop.permute.xlu0 %1454
        %v1457 = vsel %vm687, %v865, %v1447
        %vm1458 = vcmask 130048
        %v1459 = vsel %vm1458, %v1457, %v1451
        %vm1460 = vcmask 195584
        %v1461 = vsel %vm1460, %v1459, %v1455
        %v1462 = vpack.c.bf16 %v1461, %v1461
        %v1463 = vld [vmem:[%s9] sm:$0xf]
        %v1464 = vld [vmem:[%s9 + $0x4] sm:$0xf]
        %v1465 = vld [vmem:[%s9 + $0x8] sm:$0xf]
        %v1466 = vld [vmem:[%s9 + $0xc] sm:$0xf]
        %v1467 = vld [vmem:[%s10] sm:$0x1]
        %v1469 = vlaneseq
        %v1470 = vshrl.u32 %v1469, 7
        %v1471 = vsub.s32 0, %v1470
        %v1472 = vrot.slane %v1467, %v1471
        %v1478 = vunpack.c.l.b16 %v1463
        %v1479 = vunpack.c.l.b16 %v1464
        %v1480 = vunpack.c.l.b16 %v1465
        %v1481 = vunpack.c.l.b16 %v1466
        %v1482 = vpack.c.b16 %v1479, %v1478
        %v1483 = vpack.c.b16 %v1481, %v1480
        %vm1486 = vcmask 261120
        %v1488 = vsel %vm1486, %v1462, 0
        %1490 = vmatprep.subr.bf16.mxu0 0
        %1491 = vmatpush1.bf16.msra.mxu0 0
        %1492 = vmatprep.subr.bf16.mxu0 0
        %1493 = vmatpush1.bf16.msra.mxu0 0
        %1494 = vmatprep.subr.bf16.mxu0 0
        %1495 = vmatpush1.bf16.msra.mxu0 0
        %1496 = vmatprep.subr.bf16.mxu0 0
        %1497 = vmatpush1.bf16.msra.mxu0 0
        %1498 = vmatprep.subr.bf16.mxu0 0
        %1499 = vmatpush1.bf16.msra.mxu0 0
        %1500 = vmatprep.subr.bf16.mxu0 0
        %1501 = vmatpush1.bf16.msra.mxu0 0
        %1502 = vmatprep.subr.bf16.mxu0 0
        %1503 = vmatpush1.bf16.msra.mxu0 %v1483
        %1504 = vmatprep.subr.bf16.mxu0 0
        %1505 = vmatpush1.bf16.msra.mxu0 %v1482
        %1506 = vmatprep.subr.bf16.mxu0 0
        %1507 = vmatpush2.bf16.msra.mxu0 0
        %1508 = vmatprep.subr.bf16.mxu0 0
        %1509 = vmatpush2.bf16.msra.mxu0 0
        %1510 = vmatprep.subr.bf16.mxu0 0
        %1511 = vmatpush2.bf16.msra.mxu0 0
        %1512 = vmatprep.subr.bf16.mxu0 0
        %1513 = vmatpush2.bf16.msra.mxu0 0
        %1514 = vmatprep.subr.bf16.mxu0 0
        %1515 = vmatpush2.bf16.msra.mxu0 0
        %1516 = vmatprep.subr.bf16.mxu0 0
        %1517 = vmatpush2.bf16.msra.mxu0 0
        %1518 = vmatprep.subr.bf16.mxu0 0
        %1519 = vmatpush2.bf16.msra.mxu0 0
        %1520 = vmatprep.subr.bf16.mxu0 0
        %1521 = vmatpush2.bf16.msra.mxu0 0
        %1522 = vmatprep.mubr.bf16.mxu0 0
        %1523 = vmatmul.mubr.bf16.gmra.mxu0 %v1488
        %v1524 = vpop.f32.mrf.mxu0
        %v1525 = vadd.f32 %v1472, %v1524
        %v1526 = vpop.f32.mrf.mxu0
        %v1527 = vpop.f32.mrf.mxu0
        %v1528 = vpop.f32.mrf.mxu0
        %1529 = vdwg.mxu0
        %1530 = vst.msk [vmem:[%s548] sm:$0xff] %vm1486, %v1525
        %s1531 = sand.u32 %s302, 1
        %s1532 = scalar_lea.sflag [#allocation5], %s1531
        %s1533 = sand.u32 %s302, 1
        %s1534 = smul.addr %s1533, 8
        %s1535 = scalar_lea.vmem [#allocation18], %s1534
        // Predicated region
        $region105: #{tpu_custom_call.1} parent=63 // pred_check
          %p1536 = pneg %p312
        $region106: #{tpu_custom_call.1} parent=63 // pred_check_branch
          %1538 = sbr.rel (%p1536) target = $region108
        $region107: #{tpu_custom_call.1} parent=63 // pred_region
          %s1540 = ssub.s32 128, 128
          %1541 = vsyncadd %s1532, %s1540
          %s1542 = sadd.s32 %s39, %s38
          %s1543 = smul.addr %s1542, 128
          %s1544 = scalar_lea.hbm %s11, %s1543
          %s1546 = sshll.u32 %s1535, 4
          %s1547 = int_to_ptr.vmem [resolvable:$true] %s1546
          %1549 = dma.vmem_to_hbm [thread:$0]  %s1547, 128, %s1544, %s1532
        $region108: #{tpu_custom_call.1} parent=63 // pred_fallthru
          _
      $region64: #{tpu_custom_call.1} parent=5 // pred_fallthru
        _
      %p1550 = scmp.le.s32.totalorder 2, %s29
      // Predicated region
      $region109: #{tpu_custom_call.1} parent=5 // pred_check
        %p1551 = pneg %p1550
      $region110: #{tpu_custom_call.1} parent=5 // pred_check_branch
        %1553 = sbr.rel (%p1551) target = $region112
      $region111: #{tpu_custom_call.1} parent=5 // pred_region
        %s1554 = ssub.s32 %s29, 2
        // Predicated region
        $region113: #{tpu_custom_call.1} parent=111 // pred_check
          %p1555 = pneg %p318
        $region114: #{tpu_custom_call.1} parent=111 // pred_check_branch
          %1557 = sbr.rel (%p1555) target = $region116
        $region115: #{tpu_custom_call.1} parent=111 // pred_region
          %s1558 = sand.u32 %s303, 1
          %s1559 = scalar_lea.sflag [#allocation5], %s1558
          %s1560 = sand.u32 %s303, 1
          %s1561 = smul.addr %s1560, 8
          %s1562 = scalar_lea.vmem [#allocation18], %s1561
          %1563 = dma.done %s1559, 128
        $region116: #{tpu_custom_call.1} parent=111 // pred_fallthru
          _
      $region112: #{tpu_custom_call.1} parent=5 // pred_fallthru
        _
    $region6: #{tpu_custom_call.1} parent=1 // loop_footer
      %s33 = sadd.s32 1, %s29
    $region7: #{tpu_custom_call.1} parent=1 // loop_footer_branch
      %28 = sbr.rel target = $region3
    $region8: #{tpu_custom_call.1} parent=1 // loop_exit
      _
    %1564 = vsyncpa [#allocation4], 1
    %s1565 = scalar_lea.sflag [#allocation4], 1
    %1566 = vsyncpa %s1565, 1
    %1567 = vsyncpa [#allocation7], 1
    %s1568 = scalar_lea.sflag [#allocation7], 1
    %1569 = vsyncpa %s1568, 1
    %1570 = vsyncpa [#allocation10], 1
    %1571 = vsyncpa [#allocation13], 1
    %1572 = vsyncpa [#allocation16], 1
    %1573 = vsyncpa [#allocation5], 1
    %s1574 = scalar_lea.sflag [#allocation5], 1
    %1575 = vsyncpa %s1574, 1

</llo_original>
